<compile_context>
chip_gen: v6e
topology: v6e:2x2x1
jax: 0.10.0
libtpu: 0.0.40
codegen_flags: <defaults>
</compile_context>

<pallas_src>
import functools

import jax
import jax.numpy as jnp
from jax.experimental import pallas as pl
from jax.experimental.pallas import tpu as pltpu

EXPANSION = 2           # SEResNeXtBottleneck.expansion
GROUPS = 32
REDUCTION = 16


# ----------------------------------------------------------------------------
# small helpers
# ----------------------------------------------------------------------------
def _round_up(v, m):
    return (v + m - 1) // m * m


def _pick_lane_tile(d):
    """Tile for a lane (last) dimension: multiple of 128, prefer big tiles w/o padding."""
    d128 = _round_up(d, 128)
    for t in (512, 384, 256, 128):
        if d128 % t == 0:
            return t
    return 128


def _pick_m_tile(m):
    """Tile for the row (sublane) dimension: multiple of 8, up to 512."""
    m8 = _round_up(m, 8)
    if m8 <= 512:
        return m8
    for t in (512, 256, 384, 128):
        if m8 % t == 0:
            return t
    return 256


# ----------------------------------------------------------------------------
# Pallas kernels
# ----------------------------------------------------------------------------
def _bmm_affine_kernel(x_ref, w_ref, s_ref, b_ref, o_ref, acc_ref, *, relu):
    """Batched (stack axis) matmul: o[s] = act((x[s] @ w[s]) * scale[s] + shift[s]).

    Grid = (stack, M tiles, N tiles, K tiles); K is the reduction axis (last/fastest).
    bf16 operands, f32 accumulator, f32 epilogue, bf16/f32 store.
    """
    @pl.when(pl.program_id(3) == 0)
    def _():
        acc_ref[...] = jnp.zeros_like(acc_ref)

    acc_ref[...] += jnp.dot(x_ref[0], w_ref[0], preferred_element_type=jnp.float32)

    @pl.when(pl.program_id(3) == pl.num_programs(3) - 1)
    def _():
        y = acc_ref[...] * s_ref[0] + b_ref[0]
        if relu:
            y = jnp.maximum(y, 0.0)
        o_ref[0] = y.astype(o_ref.dtype)


def _gconv_chunk_kernel(x_ref, w_ref, s_ref, b_ref, o_ref, *, relu):
    """Group-chunked (block-diagonal) grouped-conv matmul.

    x block: (TM, GC*Kg); w block: (1, GC*Kg, GC*cout_g) block-diagonal;
    output block (TM, GC*cout_g) is lane-dense (128 wide).
    """
    y = jnp.dot(x_ref[...], w_ref[0], preferred_element_type=jnp.float32)
    y = y * s_ref[0] + b_ref[0]
    if relu:
        y = jnp.maximum(y, 0.0)
    o_ref[...] = y.astype(o_ref.dtype)


def _se_gate_kernel(x_ref, w1_ref, b1_ref, w2_ref, b2_ref, gate_ref):
    """SE gate per batch row: gate = sigmoid(fc2(relu(fc1(mean_hw(x)))))."""
    x = x_ref[0].astype(jnp.float32)                       # (HW, C)
    pooled = jnp.mean(x, axis=0, keepdims=True)            # (1, C)
    h = jnp.dot(pooled, w1_ref[0], preferred_element_type=jnp.float32) + b1_ref[0]
    h = jnp.maximum(h, 0.0)
    g = jnp.dot(h, w2_ref[0], preferred_element_type=jnp.float32) + b2_ref[0]
    gate_ref[0] = jax.nn.sigmoid(g)                        # (1, C) f32


def _gate_mul_kernel(x_ref, g_ref, o_ref):
    """o = x * gate (SE scaling, no residual)."""
    y = x_ref[...].astype(jnp.float32) * g_ref[...]
    o_ref[...] = y.astype(o_ref.dtype)


def _gate_mul_add_relu_kernel(x_ref, g_ref, r_ref, o_ref):
    """o = relu(x * gate + residual) — fused SE scaling + residual add + ReLU."""
    y = x_ref[...].astype(jnp.float32) * g_ref[...] + r_ref[...].astype(jnp.float32)
    o_ref[...] = jnp.maximum(y, 0.0).astype(o_ref.dtype)


def _tail_kernel(x_ref, w1_ref, b1_ref, w2_ref, b2_ref, o_ref):
    """Fused classifier tail: GAP -> (Dropout identity) -> fc1+ReLU -> fc2."""
    x = x_ref[...].astype(jnp.float32)                     # (B, HW, C)
    pooled = jnp.mean(x, axis=1)                           # (B, C)
    h = jnp.dot(pooled, w1_ref[...], preferred_element_type=jnp.float32) + b1_ref[...]
    h = jnp.maximum(h, 0.0)
    logits = jnp.dot(h, w2_ref[...], preferred_element_type=jnp.float32) + b2_ref[...]
    o_ref[...] = logits.astype(o_ref.dtype)


# ----------------------------------------------------------------------------
# Pallas wrappers
# ----------------------------------------------------------------------------
def batched_matmul_affine(x, w, scale, shift, relu, out_dtype=jnp.bfloat16):
    """x: (S, M, K); w: (S, K, N); scale/shift: (S, N). Returns (S, M, N)."""
    S, M, K = x.shape
    N = w.shape[2]
    TM = _pick_m_tile(M)
    TK = _pick_lane_tile(K)
    TN = _pick_lane_tile(N)
    Mp, Kp, Np = _round_up(M, TM), _round_up(K, TK), _round_up(N, TN)

    xp = jnp.pad(x, ((0, 0), (0, Mp - M), (0, Kp - K))).astype(jnp.bfloat16)
    wp = jnp.pad(w, ((0, 0), (0, Kp - K), (0, Np - N))).astype(jnp.bfloat16)
    sp = jnp.pad(scale.reshape(S, 1, N).astype(jnp.float32), ((0, 0), (0, 0), (0, Np - N)))
    bp = jnp.pad(shift.reshape(S, 1, N).astype(jnp.float32), ((0, 0), (0, 0), (0, Np - N)))

    out = pl.pallas_call(
        functools.partial(_bmm_affine_kernel, relu=relu),
        out_shape=jax.ShapeDtypeStruct((S, Mp, Np), out_dtype),
        grid_spec=pltpu.PrefetchScalarGridSpec(
            num_scalar_prefetch=0,
            grid=(S, Mp // TM, Np // TN, Kp // TK),
            in_specs=[
                pl.BlockSpec((1, TM, TK), lambda s, i, j, k: (s, i, k)),
                pl.BlockSpec((1, TK, TN), lambda s, i, j, k: (s, k, j)),
                pl.BlockSpec((1, 1, TN), lambda s, i, j, k: (s, 0, j)),
                pl.BlockSpec((1, 1, TN), lambda s, i, j, k: (s, 0, j)),
            ],
            out_specs=pl.BlockSpec((1, TM, TN), lambda s, i, j, k: (s, i, j)),
            scratch_shapes=[pltpu.VMEM((TM, TN), jnp.float32)],
        ),
        compiler_params=pltpu.CompilerParams(
            dimension_semantics=("parallel", "parallel", "parallel", "arbitrary")),
    )(xp, wp, sp, bp)
    return out[:, :M, :N]


def _im2col(x, kh, kw, stride, padding):
    """x: (B, H, W, C) -> patches (B, Ho, Wo, kh*kw*C); tap-major, channel-minor."""
    B, H, W, C = x.shape
    Hout = (H + 2 * padding - kh) // stride + 1
    Wout = (W + 2 * padding - kw) // stride + 1
    if kh == 1 and kw == 1 and stride == 1 and padding == 0:
        return x, H, W
    xp = jnp.pad(x, ((0, 0), (padding, padding), (padding, padding), (0, 0)))
    cols = []
    for dy in range(kh):
        for dx in range(kw):
            cols.append(xp[:, dy:dy + (Hout - 1) * stride + 1:stride,
                           dx:dx + (Wout - 1) * stride + 1:stride, :])
    return jnp.concatenate(cols, axis=-1), Hout, Wout


def conv2d(x, w, scale, shift, stride, padding, relu):
    """Dense conv. x: (B,H,W,Cin); w: (kh,kw,Cin,Cout); BN folded into scale/shift."""
    B, H, W, Cin = x.shape
    kh, kw, _, Cout = w.shape
    patches, Hout, Wout = _im2col(x, kh, kw, stride, padding)
    M = B * Hout * Wout
    K = kh * kw * Cin
    y = batched_matmul_affine(patches.reshape(1, M, K), w.reshape(1, K, Cout),
                              scale.reshape(1, Cout), shift.reshape(1, Cout), relu)
    return y[0].reshape(B, Hout, Wout, Cout)


def conv2d_multi(x, w, scale, shift, stride, padding, relu, stacks):
    """Per-stack (modality) dense conv on a batch-merged tensor.

    x: (S*B, H, W, Cin) ordered stack-major; w: (S, kh, kw, Cin, Cout); scale/shift: (S, Cout).
    """
    SB, H, W, Cin = x.shape
    S = stacks
    kh, kw = w.shape[1], w.shape[2]
    Cout = w.shape[4]
    patches, Hout, Wout = _im2col(x, kh, kw, stride, padding)
    Mper = (SB // S) * Hout * Wout
    K = kh * kw * Cin
    y = batched_matmul_affine(patches.reshape(S, Mper, K), w.reshape(S, K, Cout),
                              scale, shift, relu)
    return y.reshape(SB, Hout, Wout, Cout)


def grouped_conv2d(x, w, scale, shift, stride, padding, relu, groups):
    """Grouped conv. x: (B,H,W,Cin); w: (G,kh,kw,Cin_g,Cout_g); scale/shift: (G*Cout_g,).

    Groups are packed in chunks with a block-diagonal weight so the per-step output is
    lane-dense (>=128 wide); grid = (group_chunks, M tiles), both parallel.
    """
    B, H, W, Cin = x.shape
    G = groups
    cin_g = Cin // G
    _, kh, kw, _, cout_g = w.shape
    Cout = G * cout_g

    xp = jnp.pad(x, ((0, 0), (padding, padding), (padding, padding), (0, 0)))
    Hout = (H + 2 * padding - kh) // stride + 1
    Wout = (W + 2 * padding - kw) // stride + 1
    cols = []
    for dy in range(kh):
        for dx in range(kw):
            cols.append(xp[:, dy:dy + (Hout - 1) * stride + 1:stride,
                           dx:dx + (Wout - 1) * stride + 1:stride, :])
    patches = jnp.stack(cols, axis=-2)                      # (B,Ho,Wo,kh*kw,Cin)
    M = B * Hout * Wout
    Kg = kh * kw * cin_g
    # Reorder K to group-major: (M, G, kh*kw, cin_g) -> (M, G*Kg).
    patches = patches.reshape(M, kh * kw, G, cin_g).transpose(0, 2, 1, 3).reshape(M, G * Kg)

    # Pack groups into lane-dense chunks.
    GC = max(1, min(G, 128 // cout_g)) if cout_g <= 128 else 1
    while G % GC != 0:
        GC -= 1
    n_chunks = G // GC
    Kc = GC * Kg
    Nc = GC * cout_g
    # TODO(synk): general fallback padding if Kc/Nc are not multiples of 128 (not needed here).

    # Block-diagonal per-chunk weight: (n_chunks, Kc, Nc).
    Wg = w.reshape(G, Kg, cout_g).astype(jnp.bfloat16)
    Wc = Wg.reshape(n_chunks, GC, Kg, cout_g)
    eye = jnp.eye(GC, dtype=Wc.dtype)
    Wbd = jnp.einsum('cgkn,gh->cgkhn', Wc, eye).reshape(n_chunks, Kc, Nc)

    TM = _pick_m_tile(M)
    Mp = _round_up(M, TM)
    Xp = jnp.pad(patches, ((0, Mp - M), (0, 0))).astype(jnp.bfloat16)
    Sc = scale.reshape(n_chunks, 1, Nc).astype(jnp.float32)
    Bc = shift.reshape(n_chunks, 1, Nc).astype(jnp.float32)

    out = pl.pallas_call(
        functools.partial(_gconv_chunk_kernel, relu=relu),
        out_shape=jax.ShapeDtypeStruct((Mp, Cout), jnp.bfloat16),
        grid_spec=pltpu.PrefetchScalarGridSpec(
            num_scalar_prefetch=0,
            grid=(n_chunks, Mp // TM),
            in_specs=[
                pl.BlockSpec((TM, Kc), lambda c, m: (m, c)),
                pl.BlockSpec((1, Kc, Nc), lambda c, m: (c, 0, 0)),
                pl.BlockSpec((1, 1, Nc), lambda c, m: (c, 0, 0)),
                pl.BlockSpec((1, 1, Nc), lambda c, m: (c, 0, 0)),
            ],
            out_specs=pl.BlockSpec((TM, Nc), lambda c, m: (m, c)),
        ),
        compiler_params=pltpu.CompilerParams(
            dimension_semantics=("parallel", "parallel")),
    )(Xp, Wbd, Sc, Bc)
    return out[:M].reshape(B, Hout, Wout, Cout)


def se_gates(x, w1, b1, w2, b2, sel_div):
    """SE gates. x: (NB, HW, C); weights stacked on a leading axis S; the weight set for
    batch row b is b // sel_div. Returns gates (NB, 1, C) in f32."""
    NB, HW, C = x.shape
    S, _, Cr = w1.shape
    # TODO(synk): for very large HW this loads one full (HW, C) block per batch row; a
    # two-pass tiled pooling would be needed at much larger resolutions.
    return pl.pallas_call(
        _se_gate_kernel,
        out_shape=jax.ShapeDtypeStruct((NB, 1, C), jnp.float32),
        grid_spec=pltpu.PrefetchScalarGridSpec(
            num_scalar_prefetch=0,
            grid=(NB,),
            in_specs=[
                pl.BlockSpec((1, HW, C), lambda b: (b, 0, 0)),
                pl.BlockSpec((1, C, Cr), lambda b: (b // sel_div, 0, 0)),
                pl.BlockSpec((1, 1, Cr), lambda b: (b // sel_div, 0, 0)),
                pl.BlockSpec((1, Cr, C), lambda b: (b // sel_div, 0, 0)),
                pl.BlockSpec((1, 1, C), lambda b: (b // sel_div, 0, 0)),
            ],
            out_specs=pl.BlockSpec((1, 1, C), lambda b: (b, 0, 0)),
        ),
        compiler_params=pltpu.CompilerParams(dimension_semantics=("parallel",)),
    )(x, w1.astype(jnp.float32), b1.reshape(S, 1, Cr).astype(jnp.float32),
      w2.astype(jnp.float32), b2.reshape(S, 1, C).astype(jnp.float32))


def apply_gate(x, gates, residual=None):
    """x: (NB, HW, C) bf16; gates: (NB, 1, C) f32; optional residual (NB, HW, C).

    residual is None  -> x * gate                       (SE scaling only)
    residual provided -> relu(x * gate + residual)      (fused SE + residual add + ReLU)
    """
    NB, HW, C = x.shape
    TR = min(512, _round_up(HW, 8))
    HWp = _round_up(HW, TR)
    pad = ((0, 0), (0, HWp - HW), (0, 0))
    xp = jnp.pad(x, pad)

    if residual is None:
        kern = _gate_mul_kernel
        args = (xp, gates)
        in_specs = [
            pl.BlockSpec((1, TR, C), lambda b, r: (b, r, 0)),
            pl.BlockSpec((1, 1, C), lambda b, r: (b, 0, 0)),
        ]
    else:
        kern = _gate_mul_add_relu_kernel
        args = (xp, gates, jnp.pad(residual, pad))
        in_specs = [
            pl.BlockSpec((1, TR, C), lambda b, r: (b, r, 0)),
            pl.BlockSpec((1, 1, C), lambda b, r: (b, 0, 0)),
            pl.BlockSpec((1, TR, C), lambda b, r: (b, r, 0)),
        ]

    out = pl.pallas_call(
        kern,
        out_shape=jax.ShapeDtypeStruct((NB, HWp, C), jnp.bfloat16),
        grid_spec=pltpu.PrefetchScalarGridSpec(
            num_scalar_prefetch=0,
            grid=(NB, HWp // TR),
            in_specs=in_specs,
            out_specs=pl.BlockSpec((1, TR, C), lambda b, r: (b, r, 0)),
        ),
        compiler_params=pltpu.CompilerParams(
            dimension_semantics=("parallel", "parallel")),
    )(*args)
    return out[:, :HW, :]


def classifier_tail(x, w1, b1, w2, b2):
    """Fused GAP -> Dropout(identity) -> Linear(1024,256)+ReLU -> Linear(256,num_class)."""
    B = x.shape[0]
    NC = w2.shape[1]
    return pl.pallas_call(
        _tail_kernel,
        out_shape=jax.ShapeDtypeStruct((B, NC), jnp.float32),
    )(x, w1.astype(jnp.float32), b1.reshape(1, -1).astype(jnp.float32),
      w2.astype(jnp.float32), b2.reshape(1, -1).astype(jnp.float32))


# ----------------------------------------------------------------------------
# Model blocks (glue around the kernels)
# ----------------------------------------------------------------------------
def se_resnext_block(x, p):
    out = conv2d(x, p["conv1_w"], p["bn1_s"], p["bn1_b"], stride=1, padding=0, relu=True)
    out = grouped_conv2d(out, p["conv2_w"], p["bn2_s"], p["bn2_b"],
                         stride=p["stride"], padding=1, relu=True, groups=GROUPS)
    out = conv2d(out, p["conv3_w"], p["bn3_s"], p["bn3_b"], stride=1, padding=0, relu=False)
    if "down_w" in p:
        residual = conv2d(x, p["down_w"], p["down_s"], p["down_b"],
                          stride=p["stride"], padding=0, relu=False)
    else:
        residual = x
    B, H, W, C = out.shape
    out2 = out.reshape(B, H * W, C)
    res2 = residual.reshape(B, H * W, C)
    gates = se_gates(out2, p["se"]["w1"][None], p["se"]["b1"][None],
                     p["se"]["w2"][None], p["se"]["b2"][None], sel_div=B)
    out2 = apply_gate(out2, gates, residual=res2)
    return out2.reshape(B, H, W, C)


def fusion_net_forward(x_nchw, params):
    """x_nchw: (B, 9, H, W) float32. Returns (logits, None, None) like the PyTorch module."""
    x = jnp.transpose(x_nchw, (0, 2, 3, 1)).astype(jnp.float32)   # NCHW -> NHWC
    B, H, W, _ = x.shape

    # Merge the three shape-identical modality backbones along the batch axis:
    # merged batch ordering is [color(0..B-1), depth(B..2B-1), ir(2B..3B-1)].
    xm = jnp.stack([x[..., 0:3], x[..., 3:6], x[..., 6:9]], axis=0)   # (3, B, H, W, 3)
    xm = xm * params["first_bn_s"][:, None, None, None, :] \
            + params["first_bn_b"][:, None, None, None, :]
    feat = xm.astype(jnp.bfloat16).reshape(3 * B, H, W, 3)

    # TODO(synk): stand-in for FaceBagNet_model_A.Net.forward_res3 (stride-8, 256 channels).
    for (w3, s3, b3) in params["stem"]:
        feat = conv2d_multi(feat, w3, s3, b3, stride=2, padding=1, relu=True, stacks=3)

    NB, h, wsp, C = feat.shape                                        # (3B, H/8, W/8, 256)
    feat2 = feat.reshape(NB, h * wsp, C)
    gates = se_gates(feat2, params["se_w1"], params["se_b1"],
                     params["se_w2"], params["se_b2"], sel_div=B)
    feat2 = apply_gate(feat2, gates)                                  # modality SE scaling

    # Channel concat (torch.cat dim=1): color | depth | ir.
    fea = feat2.reshape(3, B, h, wsp, C).transpose(1, 2, 3, 0, 4).reshape(B, h, wsp, 3 * C)
    fea = conv2d(fea, params["bottleneck_w"], params["bottleneck_s"], params["bottleneck_b"],
                 stride=1, padding=0, relu=True)

    out = fea
    for bp in params["res_0"]:
        out = se_resnext_block(out, bp)
    for bp in params["res_1"]:
        out = se_resnext_block(out, bp)

    Bn, hh, ww, Cf = out.shape
    logits = classifier_tail(out.reshape(Bn, hh * ww, Cf),
                             params["fc1_w"], params["fc1_b"],
                             params["fc2_w"], params["fc2_b"])
    return logits, None, None


# ----------------------------------------------------------------------------
# Deterministic parameter initialization (synthetic; BN folded to inference affine)
# ----------------------------------------------------------------------------
class KeyGen:
    def __init__(self, seed):
        self._key = jax.random.PRNGKey(seed)

    def __call__(self):
        self._key, k = jax.random.split(self._key)
        return k


def _conv_w(kg, kh, kw, cin, cout):
    std = (2.0 / (kh * kw * cin)) ** 0.5
    return jax.random.normal(kg(), (kh, kw, cin, cout), jnp.float32) * std


def _gconv_w(kg, g, kh, kw, cin_g, cout_g):
    std = (2.0 / (kh * kw * cin_g)) ** 0.5
    return jax.random.normal(kg(), (g, kh, kw, cin_g, cout_g), jnp.float32) * std


def _bn_affine(kg, c):
    s = jax.random.uniform(kg(), (c,), jnp.float32, 0.8, 1.2)
    b = jax.random.normal(kg(), (c,), jnp.float32) * 0.1
    return s, b


def _se_params(kg, c, r):
    cr = c // r
    return {
        "w1": jax.random.normal(kg(), (c, cr), jnp.float32) * (2.0 / c) ** 0.5,
        "b1": jax.random.normal(kg(), (cr,), jnp.float32) * 0.05,
        "w2": jax.random.normal(kg(), (cr, c), jnp.float32) * (2.0 / cr) ** 0.5,
        "b2": jax.random.normal(kg(), (c,), jnp.float32) * 0.05,
    }


def _block_params(kg, inplanes, planes, stride, downsample):
    width = (planes * 4 // 64) * GROUPS
    outc = planes * EXPANSION
    bn1 = _bn_affine(kg, width)
    bn2 = _bn_affine(kg, width)
    bn3 = _bn_affine(kg, outc)
    p = {
        "conv1_w": _conv_w(kg, 1, 1, inplanes, width), "bn1_s": bn1[0], "bn1_b": bn1[1],
        "conv2_w": _gconv_w(kg, GROUPS, 3, 3, width // GROUPS, width // GROUPS),
        "bn2_s": bn2[0], "bn2_b": bn2[1],
        "conv3_w": _conv_w(kg, 1, 1, width, outc), "bn3_s": bn3[0], "bn3_b": bn3[1],
        "se": _se_params(kg, outc, REDUCTION),
        "stride": stride,
    }
    if downsample:
        dbn = _bn_affine(kg, outc)
        p["down_w"] = _conv_w(kg, 1, 1, inplanes, outc)
        p["down_s"], p["down_b"] = dbn
    return p


def make_fusion_net_params(seed=0, num_class=2):
    kg = KeyGen(seed)

    # Per-modality (color/depth/ir) stand-in stems, stacked on a leading modality axis.
    stem_dims = [(3, 64), (64, 128), (128, 256)]
    stem = []
    for cin, cout in stem_dims:
        ws, ss, bs = [], [], []
        for _ in range(3):
            ws.append(_conv_w(kg, 3, 3, cin, cout))
            s_, b_ = _bn_affine(kg, cout)
            ss.append(s_), bs.append(b_)
        stem.append((jnp.stack(ws, 0), jnp.stack(ss, 0), jnp.stack(bs, 0)))
    fbn = [_bn_affine(kg, 3) for _ in range(3)]
    se_mod = [_se_params(kg, 256, REDUCTION) for _ in range(3)]

    bneck_bn = _bn_affine(kg, 256)
    params = {
        "first_bn_s": jnp.stack([f[0] for f in fbn], 0),
        "first_bn_b": jnp.stack([f[1] for f in fbn], 0),
        "stem": stem,
        "se_w1": jnp.stack([p["w1"] for p in se_mod], 0),
        "se_b1": jnp.stack([p["b1"] for p in se_mod], 0),
        "se_w2": jnp.stack([p["w2"] for p in se_mod], 0),
        "se_b2": jnp.stack([p["b2"] for p in se_mod], 0),
        # nn.Conv2d(768,256,1) (bias) + BN folded into per-channel affine:
        "bottleneck_w": _conv_w(kg, 1, 1, 256 * 3, 256),
        "bottleneck_s": bneck_bn[0], "bottleneck_b": bneck_bn[1],
        "res_0": [_block_params(kg, 256, 256, 2, True),
                  _block_params(kg, 256 * EXPANSION, 256, 1, False)],
        "res_1": [_block_params(kg, 256 * EXPANSION, 512, 2, True),
                  _block_params(kg, 512 * EXPANSION, 512, 1, False)],
        "fc1_w": jax.random.normal(kg(), (512 * EXPANSION, 256), jnp.float32) * (1.0 / 1024) ** 0.5,
        "fc1_b": jax.random.normal(kg(), (256,), jnp.float32) * 0.05,
        "fc2_w": jax.random.normal(kg(), (256, num_class), jnp.float32) * (1.0 / 256) ** 0.5,
        "fc2_b": jax.random.normal(kg(), (num_class,), jnp.float32) * 0.05,
    }
    return params


# ----------------------------------------------------------------------------
if __name__ == "__main__":
    params = make_fusion_net_params(seed=0, num_class=2)
    x = jax.random.normal(jax.random.PRNGKey(0), (2, 9, 32, 32), jnp.float32)  # NCHW, 9 = RGB+depth+IR
    logits, _, _ = fusion_net_forward(x, params)
    logits = jax.block_until_ready(logits)
    assert logits.shape == (2, 2), logits.shape
    assert bool(jnp.all(jnp.isfinite(logits)))
    print("KERNEL_OK")
</pallas_src>

<mosaic_0001>
module attributes {stable_mosaic.version = 11 : i64} {
  func.func @_bmm_affine_kernel(%arg0: i32, %arg1: i32, %arg2: i32, %arg3: i32, %arg4: memref<1x512x128xbf16, #tpu.memory_space<vmem>>, %arg5: memref<1x128x128xbf16, #tpu.memory_space<vmem>>, %arg6: memref<1x1x128xf32, #tpu.memory_space<vmem>>, %arg7: memref<1x1x128xf32, #tpu.memory_space<vmem>>, %arg8: memref<1x512x128xbf16, #tpu.memory_space<vmem>>, %arg9: memref<512x128xf32, #tpu.memory_space<vmem>>) attributes {dimension_semantics = [#tpu.dimension_semantics<parallel>, #tpu.dimension_semantics<parallel>, #tpu.dimension_semantics<parallel>, #tpu.dimension_semantics<arbitrary>], iteration_bounds = array<i64: 3, 1, 1, 1>, scalar_prefetch = 0 : i64, scratch_operands = 1 : i64, tpu.core_type = #tpu.core_type<tc>, window_params = [{transform_indices = @transform_0, window_bounds = array<i64: 1, 512, 128>}, {transform_indices = @transform_1, window_bounds = array<i64: 1, 128, 128>}, {transform_indices = @transform_2, window_bounds = array<i64: 1, 1, 128>}, {transform_indices = @transform_3, window_bounds = array<i64: 1, 1, 128>}, {transform_indices = @transform_4, window_bounds = array<i64: 1, 512, 128>}]} {
    %c0_i32 = arith.constant 0 : i32
    %0 = arith.cmpi eq, %arg3, %c0_i32 : i32
    %1 = arith.extui %0 : i1 to i32
    %c0_i32_0 = arith.constant 0 : i32
    %2 = arith.cmpi ne, %1, %c0_i32_0 : i32
    scf.if %2 {
      %cst_12 = arith.constant 0.000000e+00 : f32
      %14 = vector.broadcast %cst_12 : f32 to vector<512x128xf32>
      %c0_13 = arith.constant 0 : index
      %c0_14 = arith.constant 0 : index
      %15 = vector.load %arg9[%c0_13, %c0_14] : memref<512x128xf32, #tpu.memory_space<vmem>>, vector<512x128xf32>
      tpu.vector_store %arg9[%c0_13, %c0_14], %14 {strides = array<i32>} : memref<512x128xf32, #tpu.memory_space<vmem>>, vector<512x128xf32>,
    } else {
    }
    %c0 = arith.constant 0 : index
    %c0_1 = arith.constant 0 : index
    %3 = vector.load %arg9[%c0, %c0_1] : memref<512x128xf32, #tpu.memory_space<vmem>>, vector<512x128xf32>
    %c0_2 = arith.constant 0 : index
    %c0_3 = arith.constant 0 : index
    %c0_4 = arith.constant 0 : index
    %4 = vector.load %arg4[%c0_2, %c0_3, %c0_4] : memref<1x512x128xbf16, #tpu.memory_space<vmem>>, vector<1x512x128xbf16>
    %5 = vector.shape_cast %4 : vector<1x512x128xbf16> to vector<512x128xbf16>
    %c0_5 = arith.constant 0 : index
    %c0_6 = arith.constant 0 : index
    %c0_7 = arith.constant 0 : index
    %6 = vector.load %arg5[%c0_5, %c0_6, %c0_7] : memref<1x128x128xbf16, #tpu.memory_space<vmem>>, vector<1x128x128xbf16>
    %7 = vector.shape_cast %6 : vector<1x128x128xbf16> to vector<128x128xbf16>
    %cst = arith.constant dense<0.000000e+00> : vector<512x128xf32>
    %8 = tpu.matmul %5, %7, %cst {dimension_numbers = #tpu.dot_dimension_numbers<[1], [0], [0], [1], [0, 0, 1, 1], [], []>} : vector<512x128xbf16>, vector<128x128xbf16>, vector<512x128xf32> -> vector<512x128xf32>
    %9 = arith.addf %3, %8 : vector<512x128xf32>
    %c0_8 = arith.constant 0 : index
    %c0_9 = arith.constant 0 : index
    %10 = vector.load %arg9[%c0_8, %c0_9] : memref<512x128xf32, #tpu.memory_space<vmem>>, vector<512x128xf32>
    tpu.vector_store %arg9[%c0_8, %c0_9], %9 {strides = array<i32>} : memref<512x128xf32, #tpu.memory_space<vmem>>, vector<512x128xf32>,
    %c0_i32_10 = arith.constant 0 : i32
    %11 = arith.cmpi eq, %arg3, %c0_i32_10 : i32
    %12 = arith.extui %11 : i1 to i32
    %c0_i32_11 = arith.constant 0 : i32
    %13 = arith.cmpi ne, %12, %c0_i32_11 : i32
    scf.if %13 {
      %c0_12 = arith.constant 0 : index
      %c0_13 = arith.constant 0 : index
      %14 = vector.load %arg9[%c0_12, %c0_13] : memref<512x128xf32, #tpu.memory_space<vmem>>, vector<512x128xf32>
      %c0_14 = arith.constant 0 : index
      %c0_15 = arith.constant 0 : index
      %c0_16 = arith.constant 0 : index
      %15 = vector.load %arg6[%c0_14, %c0_15, %c0_16] : memref<1x1x128xf32, #tpu.memory_space<vmem>>, vector<1x1x128xf32>
      %16 = vector.shape_cast %15 : vector<1x1x128xf32> to vector<1x128xf32>
      %17 = vector.broadcast %16 : vector<1x128xf32> to vector<512x128xf32>
      %18 = arith.mulf %14, %17 : vector<512x128xf32>
      %c0_17 = arith.constant 0 : index
      %c0_18 = arith.constant 0 : index
      %c0_19 = arith.constant 0 : index
      %19 = vector.load %arg7[%c0_17, %c0_18, %c0_19] : memref<1x1x128xf32, #tpu.memory_space<vmem>>, vector<1x1x128xf32>
      %20 = vector.shape_cast %19 : vector<1x1x128xf32> to vector<1x128xf32>
      %21 = vector.broadcast %20 : vector<1x128xf32> to vector<512x128xf32>
      %22 = arith.addf %18, %21 : vector<512x128xf32>
      %cst_20 = arith.constant 0.000000e+00 : f32
      %23 = vector.broadcast %cst_20 : f32 to vector<512x128xf32>
      %24 = arith.maximumf %22, %23 : vector<512x128xf32>
      %25 = arith.truncf %24 : vector<512x128xf32> to vector<512x128xbf16>
      %c0_21 = arith.constant 0 : index
      %c0_22 = arith.constant 0 : index
      %c0_23 = arith.constant 0 : index
      %26 = vector.load %arg8[%c0_21, %c0_22, %c0_23] : memref<1x512x128xbf16, #tpu.memory_space<vmem>>, vector<1x512x128xbf16>
      %27 = vector.shape_cast %26 : vector<1x512x128xbf16> to vector<512x128xbf16>
      %28 = vector.shape_cast %25 : vector<512x128xbf16> to vector<1x512x128xbf16>
      tpu.vector_store %arg8[%c0_21, %c0_22, %c0_23], %28 {strides = array<i32>} : memref<1x512x128xbf16, #tpu.memory_space<vmem>>, vector<1x512x128xbf16>,
    } else {
    }
    return
  }
  func.func @transform_0(%arg0: i32, %arg1: i32, %arg2: i32, %arg3: i32) -> (i32, i32, i32) {
    %c0_i32 = arith.constant 0 : i32
    return %arg0, %arg1, %arg3 : i32, i32, i32
  }
  func.func @transform_1(%arg0: i32, %arg1: i32, %arg2: i32, %arg3: i32) -> (i32, i32, i32) {
    %c0_i32 = arith.constant 0 : i32
    return %arg0, %arg3, %arg2 : i32, i32, i32
  }
  func.func @transform_2(%arg0: i32, %arg1: i32, %arg2: i32, %arg3: i32) -> (i32, i32, i32) {
    %c0_i32 = arith.constant 0 : i32
    %c0_i32_0 = arith.constant 0 : i32
    return %arg0, %c0_i32, %arg2 : i32, i32, i32
  }
  func.func @transform_3(%arg0: i32, %arg1: i32, %arg2: i32, %arg3: i32) -> (i32, i32, i32) {
    %c0_i32 = arith.constant 0 : i32
    %c0_i32_0 = arith.constant 0 : i32
    return %arg0, %c0_i32, %arg2 : i32, i32, i32
  }
  func.func @transform_4(%arg0: i32, %arg1: i32, %arg2: i32, %arg3: i32) -> (i32, i32, i32) {
    %c0_i32 = arith.constant 0 : i32
    return %arg0, %arg1, %arg2 : i32, i32, i32
  }
}

</mosaic_0001>

<llo_original>
// kernel: tpu_custom_call.1
$region0: #{tpu_custom_call.1}
  #allocation0 [shape = 'u32[]', space=smem, size = 0x4, offset = 0x4, fixed_abs, tag = 'smem constant byte address 0x4 - core index']
  #allocation1 [shape = 'u32[144,128]{1,0:T(1,128)}', space=vmem, size = 0x12000, scoped, tag = 'internal scratch']
  #allocation2 [shape = 'f32[512,128]{1,0:T(8,128)}', space=vmem, size = 0x40000, scoped, tag = 'scratch operand']
  %s0 = inlined_call_operand.hbm [shape: bf16[3,512,128], index: 0, kind: input, shape index: {}]
  %s1 = inlined_call_operand.hbm [shape: bf16[3,128,128], index: 1, kind: input, shape index: {}]
  %s2 = inlined_call_operand.vmem [shape: f32[3,1,128], index: 2, kind: input, shape index: {}]
  %s3 = inlined_call_operand.hbm [shape: f32[3,1,128], index: 3, kind: input, shape index: {}]
  %s4 = inlined_call_operand.hbm [shape: bf16[3,512,128], index: 4, kind: output, shape index: {}]
  %s5 = sld [smem:[#allocation0]]
  $region69: #{tpu_custom_call.1} parent=0
    _
  %s7 = ssub.s32 1, %s5
  %s8 = scalar_select 0, %s7, %s5
  $region1: #{tpu_custom_call.1} parent=0
    #allocation3 [shape = 'u8[262144]{0}', space=vmem, size = 0x40000, scoped, tag = 'input window, operand 0']
    #allocation4 [shape = 's32[2]{0}', space=sflag, size = 0x8, scoped, tag = 'scoped memory for tpu_custom_call.1']
    #allocation5 [shape = 's32[2]{0}', space=sflag, size = 0x8, scoped, tag = 'scoped memory for tpu_custom_call.1']
    #allocation6 [shape = 'u8[65536]{0}', space=vmem, size = 0x10000, scoped, tag = 'input window, operand 1']
    #allocation7 [shape = 's32[2]{0}', space=sflag, size = 0x8, scoped, tag = 'scoped memory for tpu_custom_call.1']
    #allocation8 [shape = 'u8[1024]{0}', space=vmem, size = 0x400, scoped, tag = 'input window, operand 3']
    #allocation9 [shape = 'u8[262144]{0}', space=vmem, size = 0x40000, scoped, tag = 'output window, operand 0']
    %9 = vsyncpa [#allocation4], 0
    %s10 = scalar_lea.sflag [#allocation4], 1
    %11 = vsyncpa %s10, 0
    %12 = vsyncpa [#allocation7], 0
    %s13 = scalar_lea.sflag [#allocation7], 1
    %14 = vsyncpa %s13, 0
    %15 = vsyncpa [#allocation5], 0
    %s16 = scalar_lea.sflag [#allocation5], 1
    %17 = vsyncpa %s16, 0
    loop: start=0, step=1, limit=5
    $region2: #{tpu_custom_call.1} parent=1 // loop_pre_header
      _
    $region3: #{tpu_custom_call.1} parent=1 // loop_header
      %s19 = sphi 0, %s23
      %p20 = scmp.ge.s32.totalorder %s19, 5
      %s26 = sphi 0, %s52
      %s27 = sphi 0, %s48
      %s28 = sphi 0, %s44
      %s29 = sphi 0, %s40
      %s30 = sphi 0, %s26
      %s31 = sphi 0, %s27
      %s32 = sphi 0, %s28
      %s33 = sphi 0, %s29
      %s34 = sphi 0, %s30
      %s35 = sphi 0, %s31
      %s36 = sphi 0, %s32
      %s37 = sphi 0, %s33
      %s59 = sphi 0, %s61
      %s62 = sphi 0, %s59
      %s63 = sphi 0, %s62
      %s79 = sphi 0, %s63
      %s89 = sphi 0, %s91
      %s92 = sphi 0, %s89
      %s93 = sphi 0, %s92
      %s109 = sphi 0, %s93
      %s117 = sphi 0, %s119
      %s120 = sphi 0, %s117
      %s121 = sphi 0, %s120
      %s137 = sphi 0, %s121
      %s145 = sphi 0, %s147
      %s148 = sphi 0, %s145
      %s149 = sphi 0, %s148
      %s165 = sphi 0, %s149
      %s175 = sphi 0, %s177
      %s178 = sphi 0, %s175
      %s179 = sphi 0, %s178
      %s195 = sphi 0, %s179
    $region4: #{tpu_custom_call.1} parent=1 // loop_header_branch
      %22 = sbr.rel (%p20) target = $region8
    $region5: #{tpu_custom_call.1} parent=1 // loop_body
      %s24 = ssub.s32 %s19, 1
      %s25 = ssub.s32 %s19, 2
      %s38 = sadd.s32 1, %s29
      %p39 = scmp.ge.s32.totalorder %s38, 1
      %s40 = scalar_select %p39, 0, %s38
      %s41 = sadd.s32 1, %s28
      %s42 = scalar_select %p39, %s41, %s28
      %p43 = scmp.ge.s32.totalorder %s42, 1
      %s44 = scalar_select %p43, 0, %s42
      %s45 = sadd.s32 1, %s27
      %s46 = scalar_select %p43, %s45, %s27
      %p47 = scmp.ge.s32.totalorder %s46, 1
      %s48 = scalar_select %p47, 0, %s46
      %s49 = sadd.s32 1, %s26
      %s50 = scalar_select %p47, %s49, %s26
      %p51 = scmp.ge.s32.totalorder %s50, 3
      %s52 = scalar_select %p51, 0, %s50
      %s53 = ssub.s32 %s26, %s52
      %s54 = ssub.s32 %s27, %s48
      %s55 = sor.u32 %s53, %s54
      %s56 = ssub.s32 %s29, %s40
      %s57 = sor.u32 %s55, %s56
      %p58 = scmp.eq.s32.totalorder %s57, 0
      %s60 = sadd.s32 %s59, 1
      %s61 = scalar_select %p58, %s59, %s60
      %p64 = pneg %p58
      %p65 = scmp.eq.s32.totalorder %s19, 2
      %p66 = por %p64, %p65
      %p67 = scmp.ne.s32.totalorder %s59, %s62
      %p68 = scmp.eq.s32.totalorder %s19, 0
      %p69 = por %p67, %p68
      %p70 = scmp.ne.s32.totalorder %s59, %s62
      %p71 = scmp.eq.s32.totalorder %s24, 2
      %p72 = por %p70, %p71
      %p73 = scmp.ne.s32.totalorder %s62, %s63
      %p74 = scmp.eq.s32.totalorder %s24, 0
      %p75 = por %p73, %p74
      %p76 = scmp.ne.s32.totalorder %s62, %s63
      %p77 = scmp.eq.s32.totalorder %s25, 2
      %p78 = por %p76, %p77
      %p80 = scmp.ne.s32.totalorder %s63, %s79
      %p81 = scmp.eq.s32.totalorder %s25, 0
      %p82 = por %p80, %p81
      %s83 = ssub.s32 %s26, %s52
      %s84 = ssub.s32 %s29, %s40
      %s85 = sor.u32 %s83, %s84
      %s86 = ssub.s32 %s28, %s44
      %s87 = sor.u32 %s85, %s86
      %p88 = scmp.eq.s32.totalorder %s87, 0
      %s90 = sadd.s32 %s89, 1
      %s91 = scalar_select %p88, %s89, %s90
      %p94 = pneg %p88
      %p95 = scmp.eq.s32.totalorder %s19, 2
      %p96 = por %p94, %p95
      %p97 = scmp.ne.s32.totalorder %s89, %s92
      %p98 = scmp.eq.s32.totalorder %s19, 0
      %p99 = por %p97, %p98
      %p100 = scmp.ne.s32.totalorder %s89, %s92
      %p101 = scmp.eq.s32.totalorder %s24, 2
      %p102 = por %p100, %p101
      %p103 = scmp.ne.s32.totalorder %s92, %s93
      %p104 = scmp.eq.s32.totalorder %s24, 0
      %p105 = por %p103, %p104
      %p106 = scmp.ne.s32.totalorder %s92, %s93
      %p107 = scmp.eq.s32.totalorder %s25, 2
      %p108 = por %p106, %p107
      %p110 = scmp.ne.s32.totalorder %s93, %s109
      %p111 = scmp.eq.s32.totalorder %s25, 0
      %p112 = por %p110, %p111
      %s113 = ssub.s32 %s26, %s52
      %s114 = ssub.s32 %s28, %s44
      %s115 = sor.u32 %s113, %s114
      %p116 = scmp.eq.s32.totalorder %s115, 0
      %s118 = sadd.s32 %s117, 1
      %s119 = scalar_select %p116, %s117, %s118
      %p122 = pneg %p116
      %p123 = scmp.eq.s32.totalorder %s19, 2
      %p124 = por %p122, %p123
      %p125 = scmp.ne.s32.totalorder %s117, %s120
      %p126 = scmp.eq.s32.totalorder %s19, 0
      %p127 = por %p125, %p126
      %p128 = scmp.ne.s32.totalorder %s117, %s120
      %p129 = scmp.eq.s32.totalorder %s24, 2
      %p130 = por %p128, %p129
      %p131 = scmp.ne.s32.totalorder %s120, %s121
      %p132 = scmp.eq.s32.totalorder %s24, 0
      %p133 = por %p131, %p132
      %p134 = scmp.ne.s32.totalorder %s120, %s121
      %p135 = scmp.eq.s32.totalorder %s25, 2
      %p136 = por %p134, %p135
      %p138 = scmp.ne.s32.totalorder %s121, %s137
      %p139 = scmp.eq.s32.totalorder %s25, 0
      %p140 = por %p138, %p139
      %s141 = ssub.s32 %s26, %s52
      %s142 = ssub.s32 %s28, %s44
      %s143 = sor.u32 %s141, %s142
      %p144 = scmp.eq.s32.totalorder %s143, 0
      %s146 = sadd.s32 %s145, 1
      %s147 = scalar_select %p144, %s145, %s146
      %p150 = pneg %p144
      %p151 = scmp.eq.s32.totalorder %s19, 2
      %p152 = por %p150, %p151
      %p153 = scmp.ne.s32.totalorder %s145, %s148
      %p154 = scmp.eq.s32.totalorder %s19, 0
      %p155 = por %p153, %p154
      %p156 = scmp.ne.s32.totalorder %s145, %s148
      %p157 = scmp.eq.s32.totalorder %s24, 2
      %p158 = por %p156, %p157
      %p159 = scmp.ne.s32.totalorder %s148, %s149
      %p160 = scmp.eq.s32.totalorder %s24, 0
      %p161 = por %p159, %p160
      %p162 = scmp.ne.s32.totalorder %s148, %s149
      %p163 = scmp.eq.s32.totalorder %s25, 2
      %p164 = por %p162, %p163
      %p166 = scmp.ne.s32.totalorder %s149, %s165
      %p167 = scmp.eq.s32.totalorder %s25, 0
      %p168 = por %p166, %p167
      %s169 = ssub.s32 %s26, %s52
      %s170 = ssub.s32 %s27, %s48
      %s171 = sor.u32 %s169, %s170
      %s172 = ssub.s32 %s28, %s44
      %s173 = sor.u32 %s171, %s172
      %p174 = scmp.eq.s32.totalorder %s173, 0
      %s176 = sadd.s32 %s175, 1
      %s177 = scalar_select %p174, %s175, %s176
      %p180 = pneg %p174
      %p181 = scmp.eq.s32.totalorder %s19, 2
      %p182 = por %p180, %p181
      %p183 = scmp.ne.s32.totalorder %s175, %s178
      %p184 = scmp.eq.s32.totalorder %s19, 0
      %p185 = por %p183, %p184
      %p186 = scmp.ne.s32.totalorder %s175, %s178
      %p187 = scmp.eq.s32.totalorder %s24, 2
      %p188 = por %p186, %p187
      %p189 = scmp.ne.s32.totalorder %s178, %s179
      %p190 = scmp.eq.s32.totalorder %s24, 0
      %p191 = por %p189, %p190
      %p192 = scmp.ne.s32.totalorder %s178, %s179
      %p193 = scmp.eq.s32.totalorder %s25, 2
      %p194 = por %p192, %p193
      %p196 = scmp.ne.s32.totalorder %s179, %s195
      %p197 = scmp.eq.s32.totalorder %s25, 0
      %p198 = por %p196, %p197
      %p199 = scmp.le.s32.totalorder 1, %s19
      %p200 = scmp.lt.s32.totalorder %s19, 4
      %p201 = pnand %p199, %p200
      %p202 = pneg %p201
      // Predicated region
      $region9: #{tpu_custom_call.1} parent=5 // pred_check
        _
      $region10: #{tpu_custom_call.1} parent=5 // pred_check_branch
        %204 = sbr.rel (%p201) target = $region12
      $region11: #{tpu_custom_call.1} parent=5 // pred_region
        %s205 = ssub.s32 %s19, 1
      $region12: #{tpu_custom_call.1} parent=5 // pred_fallthru
        _
      %p206 = scmp.lt.s32.totalorder %s19, 3
      // Predicated region
      $region13: #{tpu_custom_call.1} parent=5 // pred_check
        %p207 = pneg %p206
      $region14: #{tpu_custom_call.1} parent=5 // pred_check_branch
        %209 = sbr.rel (%p207) target = $region16
      $region15: #{tpu_custom_call.1} parent=5 // pred_region
        // Predicated region
        $region17: #{tpu_custom_call.1} parent=15 // pred_check
          %p210 = pneg %p69
        $region18: #{tpu_custom_call.1} parent=15 // pred_check_branch
          %212 = sbr.rel (%p210) target = $region20
        $region19: #{tpu_custom_call.1} parent=15 // pred_region
          %s213 = sand.u32 %s59, 1
          %s214 = scalar_lea.sflag [#allocation4], %s213
          %s215 = sand.u32 %s59, 1
          %s216 = smul.addr %s215, 256
          %s217 = scalar_lea.vmem [#allocation3], %s216
          %s218 = smul.u32 64, %s27
          %s220 = ssub.s32 4096, 4096
          %221 = vsyncadd %s214, %s220
          %s222 = sadd.s32 %s29, %s218
          %s223 = smul.addr %s26, 64
          %s224 = sadd.s32 %s222, %s223
          %s225 = smul.addr %s224, 64
          %s226 = scalar_lea.hbm %s0, %s225
          %s227 = sshll.u32 %s217, 4
          %s228 = int_to_ptr.vmem [resolvable:$true] %s227
          %233 = dma.hbm_to_vmem [thread:$0]  %s226, 4096, %s228, %s214, 64, 64, 4
        $region20: #{tpu_custom_call.1} parent=15 // pred_fallthru
          _
        // Predicated region
        $region21: #{tpu_custom_call.1} parent=15 // pred_check
          %p234 = pneg %p99
        $region22: #{tpu_custom_call.1} parent=15 // pred_check_branch
          %236 = sbr.rel (%p234) target = $region24
        $region23: #{tpu_custom_call.1} parent=15 // pred_region
          %s237 = sand.u32 %s19, 1
          %s238 = scalar_lea.sflag [#allocation7], %s237
          %s239 = sand.u32 %s89, 1
          %s240 = smul.addr %s239, 64
          %s241 = scalar_lea.vmem [#allocation6], %s240
          %s242 = smul.u32 16, %s29
          %s244 = ssub.s32 1024, 1024
          %245 = vsyncadd %s238, %s244
          %s246 = sadd.s32 %s28, %s242
          %s247 = smul.addr %s26, 16
          %s248 = sadd.s32 %s246, %s247
          %s249 = smul.addr %s248, 64
          %s250 = scalar_lea.hbm %s1, %s249
          %s251 = sshll.u32 %s241, 4
          %s252 = int_to_ptr.vmem [resolvable:$true] %s251
          %257 = dma.hbm_to_vmem [thread:$0]  %s250, 1024, %s252, %s238, 64, 64, 4
        $region24: #{tpu_custom_call.1} parent=15 // pred_fallthru
          _
        // Predicated region
        $region25: #{tpu_custom_call.1} parent=15 // pred_check
          %p258 = pneg %p127
        $region26: #{tpu_custom_call.1} parent=15 // pred_check_branch
          %260 = sbr.rel (%p258) target = $region28
        $region27: #{tpu_custom_call.1} parent=15 // pred_region
          %p261 = scmp.lt.s32.totalorder %s26, 2
          %s262 = scalar_select %p261, %s26, 2
          %p263 = scmp.lt.s32.totalorder %s28, 0
          %s264 = scalar_select %p263, %s28, 0
          %s265 = sadd.s32 %s264, %s262
          %s266 = scalar_lea.vmem %s2, %s265
        $region28: #{tpu_custom_call.1} parent=15 // pred_fallthru
          _
        // Predicated region
        $region29: #{tpu_custom_call.1} parent=15 // pred_check
          %p267 = pneg %p155
        $region30: #{tpu_custom_call.1} parent=15 // pred_check_branch
          %269 = sbr.rel (%p267) target = $region32
        $region31: #{tpu_custom_call.1} parent=15 // pred_region
          %s270 = sand.u32 %s19, 1
          %s271 = scalar_lea.sflag [#allocation7], %s270
          %s272 = sand.u32 %s145, 1
          %s273 = scalar_lea.vmem [#allocation8], %s272
          %s275 = ssub.s32 16, 16
          %276 = vsyncadd %s271, %s275
          %s277 = sadd.s32 %s28, %s26
          %s278 = smul.addr %s277, 16
          %s279 = scalar_lea.hbm %s3, %s278
          %s281 = sshll.u32 %s273, 4
          %s282 = int_to_ptr.vmem [resolvable:$true] %s281
          %284 = dma.hbm_to_vmem [thread:$0]  %s279, 16, %s282, %s271
        $region32: #{tpu_custom_call.1} parent=15 // pred_fallthru
          _
      $region16: #{tpu_custom_call.1} parent=5 // pred_fallthru
        _
      %p285 = scmp.le.s32.totalorder 1, %s19
      %p286 = scmp.lt.s32.totalorder %s19, 4
      %p287 = pnand %p285, %p286
      %p288 = pneg %p287
      // Predicated region
      $region33: #{tpu_custom_call.1} parent=5 // pred_check
        _
      $region34: #{tpu_custom_call.1} parent=5 // pred_check_branch
        %290 = sbr.rel (%p287) target = $region36
      $region35: #{tpu_custom_call.1} parent=5 // pred_region
        %s291 = ssub.s32 %s19, 1
        %s292 = sand.u32 %s62, 1
        %s293 = scalar_lea.sflag [#allocation4], %s292
        %s294 = sand.u32 %s62, 1
        %s295 = smul.addr %s294, 256
        %s296 = scalar_lea.vmem [#allocation3], %s295
        // Predicated region
        $region37: #{tpu_custom_call.1} parent=35 // pred_check
          %p297 = pneg %p75
        $region38: #{tpu_custom_call.1} parent=35 // pred_check_branch
          %299 = sbr.rel (%p297) target = $region40
        $region39: #{tpu_custom_call.1} parent=35 // pred_region
          %300 = dma.done %s293, 4096
        $region40: #{tpu_custom_call.1} parent=35 // pred_fallthru
          _
        %s301 = sand.u32 %s24, 1
        %s302 = scalar_lea.sflag [#allocation7], %s301
        %s303 = sand.u32 %s92, 1
        %s304 = smul.addr %s303, 64
        %s305 = scalar_lea.vmem [#allocation6], %s304
        // Predicated region
        $region41: #{tpu_custom_call.1} parent=35 // pred_check
          %p306 = pneg %p105
        $region42: #{tpu_custom_call.1} parent=35 // pred_check_branch
          %308 = sbr.rel (%p306) target = $region44
        $region43: #{tpu_custom_call.1} parent=35 // pred_region
          %309 = dma.done %s302, 1024
        $region44: #{tpu_custom_call.1} parent=35 // pred_fallthru
          _
        %s310 = sand.u32 %s24, 1
        %s311 = scalar_lea.sflag [#allocation7], %s310
        %s312 = sand.u32 %s148, 1
        %s313 = scalar_lea.vmem [#allocation8], %s312
        // Predicated region
        $region45: #{tpu_custom_call.1} parent=35 // pred_check
          %p314 = pneg %p161
        $region46: #{tpu_custom_call.1} parent=35 // pred_check_branch
          %316 = sbr.rel (%p314) target = $region48
        $region47: #{tpu_custom_call.1} parent=35 // pred_region
          %317 = dma.done %s311, 16
        $region48: #{tpu_custom_call.1} parent=35 // pred_fallthru
          _
        %s318 = sand.u32 %s62, 1
        %s319 = scalar_lea.sflag [#allocation4], %s318
        %s320 = sand.u32 %s62, 1
        %s321 = smul.addr %s320, 256
        %s322 = scalar_lea.vmem [#allocation3], %s321
        %p323 = pneg %p75
        %p324 = pneg %p72
        %s325 = sand.u32 %s24, 1
        %s326 = scalar_lea.sflag [#allocation7], %s325
        %s327 = sand.u32 %s92, 1
        %s328 = smul.addr %s327, 64
        %s329 = scalar_lea.vmem [#allocation6], %s328
        %p330 = pneg %p105
        %p331 = pneg %p102
        %p332 = scmp.lt.s32.totalorder %s30, 2
        %s333 = scalar_select %p332, %s30, 2
        %p334 = scmp.lt.s32.totalorder %s32, 0
        %s335 = scalar_select %p334, %s32, 0
        %s336 = sadd.s32 %s335, %s333
        %s337 = scalar_lea.vmem %s2, %s336
        %p338 = pneg %p133
        %p339 = pneg %p130
        %s340 = sand.u32 %s24, 1
        %s341 = scalar_lea.sflag [#allocation7], %s340
        %s342 = sand.u32 %s148, 1
        %s343 = scalar_lea.vmem [#allocation8], %s342
        %p344 = pneg %p161
        %p345 = pneg %p158
        %p346 = pneg %p191
        %p347 = pneg %p188
        %s348 = sand.u32 %s178, 1
        %s349 = scalar_lea.sflag [#allocation5], %s348
        %s350 = sand.u32 %s178, 1
        %s351 = smul.addr %s350, 256
        %s352 = scalar_lea.vmem [#allocation9], %s351
        %s353 = smul.u32 64, %s31
        %s354 = smul.u32 16, %s33
        %p355 = scmp.lt.s32.totalorder %s30, 2
        %s356 = scalar_select %p355, %s30, 2
        %p357 = scmp.lt.s32.totalorder %s32, 0
        %s358 = scalar_select %p357, %s32, 0
        %s359 = sadd.s32 %s358, %s356
        %s360 = scalar_lea.vmem %s2, %s359
        %s361 = smul.u32 64, %s31
        %p363 = scmp.eq.s32.totalorder %s33, 0
        // Predicated region
        $region49: #{tpu_custom_call.1} parent=35 // pred_check
          %p364 = pneg %p363
        $region50: #{tpu_custom_call.1} parent=35 // pred_check_branch
          %366 = sbr.rel (%p364) target = $region52
        $region51: #{tpu_custom_call.1} parent=35 // pred_region
          %367 = vst [vmem:[#allocation2] sm:$0xff] 0.0
          %368 = vst [vmem:[#allocation2 + $0x8] sm:$0xff] 0.0
          %369 = vst [vmem:[#allocation2 + $0x10] sm:$0xff] 0.0
          %370 = vst [vmem:[#allocation2 + $0x18] sm:$0xff] 0.0
          %371 = vst [vmem:[#allocation2 + $0x20] sm:$0xff] 0.0
          %372 = vst [vmem:[#allocation2 + $0x28] sm:$0xff] 0.0
          %373 = vst [vmem:[#allocation2 + $0x30] sm:$0xff] 0.0
          %374 = vst [vmem:[#allocation2 + $0x38] sm:$0xff] 0.0
          %375 = vst [vmem:[#allocation2 + $0x40] sm:$0xff] 0.0
          %376 = vst [vmem:[#allocation2 + $0x48] sm:$0xff] 0.0
          %377 = vst [vmem:[#allocation2 + $0x50] sm:$0xff] 0.0
          %378 = vst [vmem:[#allocation2 + $0x58] sm:$0xff] 0.0
          %379 = vst [vmem:[#allocation2 + $0x60] sm:$0xff] 0.0
          %380 = vst [vmem:[#allocation2 + $0x68] sm:$0xff] 0.0
          %381 = vst [vmem:[#allocation2 + $0x70] sm:$0xff] 0.0
          %382 = vst [vmem:[#allocation2 + $0x78] sm:$0xff] 0.0
          %383 = vst [vmem:[#allocation2 + $0x80] sm:$0xff] 0.0
          %384 = vst [vmem:[#allocation2 + $0x88] sm:$0xff] 0.0
          %385 = vst [vmem:[#allocation2 + $0x90] sm:$0xff] 0.0
          %386 = vst [vmem:[#allocation2 + $0x98] sm:$0xff] 0.0
          %387 = vst [vmem:[#allocation2 + $0xa0] sm:$0xff] 0.0
          %388 = vst [vmem:[#allocation2 + $0xa8] sm:$0xff] 0.0
          %389 = vst [vmem:[#allocation2 + $0xb0] sm:$0xff] 0.0
          %390 = vst [vmem:[#allocation2 + $0xb8] sm:$0xff] 0.0
          %391 = vst [vmem:[#allocation2 + $0xc0] sm:$0xff] 0.0
          %392 = vst [vmem:[#allocation2 + $0xc8] sm:$0xff] 0.0
          %393 = vst [vmem:[#allocation2 + $0xd0] sm:$0xff] 0.0
          %394 = vst [vmem:[#allocation2 + $0xd8] sm:$0xff] 0.0
          %395 = vst [vmem:[#allocation2 + $0xe0] sm:$0xff] 0.0
          %396 = vst [vmem:[#allocation2 + $0xe8] sm:$0xff] 0.0
          %397 = vst [vmem:[#allocation2 + $0xf0] sm:$0xff] 0.0
          %398 = vst [vmem:[#allocation2 + $0xf8] sm:$0xff] 0.0
          %399 = vst [vmem:[#allocation2 + $0x100] sm:$0xff] 0.0
          %400 = vst [vmem:[#allocation2 + $0x108] sm:$0xff] 0.0
          %401 = vst [vmem:[#allocation2 + $0x110] sm:$0xff] 0.0
          %402 = vst [vmem:[#allocation2 + $0x118] sm:$0xff] 0.0
          %403 = vst [vmem:[#allocation2 + $0x120] sm:$0xff] 0.0
          %404 = vst [vmem:[#allocation2 + $0x128] sm:$0xff] 0.0
          %405 = vst [vmem:[#allocation2 + $0x130] sm:$0xff] 0.0
          %406 = vst [vmem:[#allocation2 + $0x138] sm:$0xff] 0.0
          %407 = vst [vmem:[#allocation2 + $0x140] sm:$0xff] 0.0
          %408 = vst [vmem:[#allocation2 + $0x148] sm:$0xff] 0.0
          %409 = vst [vmem:[#allocation2 + $0x150] sm:$0xff] 0.0
          %410 = vst [vmem:[#allocation2 + $0x158] sm:$0xff] 0.0
          %411 = vst [vmem:[#allocation2 + $0x160] sm:$0xff] 0.0
          %412 = vst [vmem:[#allocation2 + $0x168] sm:$0xff] 0.0
          %413 = vst [vmem:[#allocation2 + $0x170] sm:$0xff] 0.0
          %414 = vst [vmem:[#allocation2 + $0x178] sm:$0xff] 0.0
          %415 = vst [vmem:[#allocation2 + $0x180] sm:$0xff] 0.0
          %416 = vst [vmem:[#allocation2 + $0x188] sm:$0xff] 0.0
          %417 = vst [vmem:[#allocation2 + $0x190] sm:$0xff] 0.0
          %418 = vst [vmem:[#allocation2 + $0x198] sm:$0xff] 0.0
          %419 = vst [vmem:[#allocation2 + $0x1a0] sm:$0xff] 0.0
          %420 = vst [vmem:[#allocation2 + $0x1a8] sm:$0xff] 0.0
          %421 = vst [vmem:[#allocation2 + $0x1b0] sm:$0xff] 0.0
          %422 = vst [vmem:[#allocation2 + $0x1b8] sm:$0xff] 0.0
          %423 = vst [vmem:[#allocation2 + $0x1c0] sm:$0xff] 0.0
          %424 = vst [vmem:[#allocation2 + $0x1c8] sm:$0xff] 0.0
          %425 = vst [vmem:[#allocation2 + $0x1d0] sm:$0xff] 0.0
          %426 = vst [vmem:[#allocation2 + $0x1d8] sm:$0xff] 0.0
          %427 = vst [vmem:[#allocation2 + $0x1e0] sm:$0xff] 0.0
          %428 = vst [vmem:[#allocation2 + $0x1e8] sm:$0xff] 0.0
          %429 = vst [vmem:[#allocation2 + $0x1f0] sm:$0xff] 0.0
          %430 = vst [vmem:[#allocation2 + $0x1f8] sm:$0xff] 0.0
        $region52: #{tpu_custom_call.1} parent=35 // pred_fallthru
          _
        %v431 = vld [vmem:[#allocation2] sm:$0xff]
        %v432 = vld [vmem:[#allocation2 + $0x8] sm:$0xff]
        %v433 = vld [vmem:[#allocation2 + $0x10] sm:$0xff]
        %v434 = vld [vmem:[#allocation2 + $0x18] sm:$0xff]
        %v435 = vld [vmem:[#allocation2 + $0x20] sm:$0xff]
        %v436 = vld [vmem:[#allocation2 + $0x28] sm:$0xff]
        %v437 = vld [vmem:[#allocation2 + $0x30] sm:$0xff]
        %v438 = vld [vmem:[#allocation2 + $0x38] sm:$0xff]
        %v439 = vld [vmem:[#allocation2 + $0x40] sm:$0xff]
        %v440 = vld [vmem:[#allocation2 + $0x48] sm:$0xff]
        %v441 = vld [vmem:[#allocation2 + $0x50] sm:$0xff]
        %v442 = vld [vmem:[#allocation2 + $0x58] sm:$0xff]
        %v443 = vld [vmem:[#allocation2 + $0x60] sm:$0xff]
        %v444 = vld [vmem:[#allocation2 + $0x68] sm:$0xff]
        %v445 = vld [vmem:[#allocation2 + $0x70] sm:$0xff]
        %v446 = vld [vmem:[#allocation2 + $0x78] sm:$0xff]
        %v447 = vld [vmem:[#allocation2 + $0x80] sm:$0xff]
        %v448 = vld [vmem:[#allocation2 + $0x88] sm:$0xff]
        %v449 = vld [vmem:[#allocation2 + $0x90] sm:$0xff]
        %v450 = vld [vmem:[#allocation2 + $0x98] sm:$0xff]
        %v451 = vld [vmem:[#allocation2 + $0xa0] sm:$0xff]
        %v452 = vld [vmem:[#allocation2 + $0xa8] sm:$0xff]
        %v453 = vld [vmem:[#allocation2 + $0xb0] sm:$0xff]
        %v454 = vld [vmem:[#allocation2 + $0xb8] sm:$0xff]
        %v455 = vld [vmem:[#allocation2 + $0xc0] sm:$0xff]
        %v456 = vld [vmem:[#allocation2 + $0xc8] sm:$0xff]
        %v457 = vld [vmem:[#allocation2 + $0xd0] sm:$0xff]
        %v458 = vld [vmem:[#allocation2 + $0xd8] sm:$0xff]
        %v459 = vld [vmem:[#allocation2 + $0xe0] sm:$0xff]
        %v460 = vld [vmem:[#allocation2 + $0xe8] sm:$0xff]
        %v461 = vld [vmem:[#allocation2 + $0xf0] sm:$0xff]
        %v462 = vld [vmem:[#allocation2 + $0xf8] sm:$0xff]
        %v463 = vld [vmem:[#allocation2 + $0x100] sm:$0xff]
        %v464 = vld [vmem:[#allocation2 + $0x108] sm:$0xff]
        %v465 = vld [vmem:[#allocation2 + $0x110] sm:$0xff]
        %v466 = vld [vmem:[#allocation2 + $0x118] sm:$0xff]
        %v467 = vld [vmem:[#allocation2 + $0x120] sm:$0xff]
        %v468 = vld [vmem:[#allocation2 + $0x128] sm:$0xff]
        %v469 = vld [vmem:[#allocation2 + $0x130] sm:$0xff]
        %v470 = vld [vmem:[#allocation2 + $0x138] sm:$0xff]
        %v471 = vld [vmem:[#allocation2 + $0x140] sm:$0xff]
        %v472 = vld [vmem:[#allocation2 + $0x148] sm:$0xff]
        %v473 = vld [vmem:[#allocation2 + $0x150] sm:$0xff]
        %v474 = vld [vmem:[#allocation2 + $0x158] sm:$0xff]
        %v475 = vld [vmem:[#allocation2 + $0x160] sm:$0xff]
        %v476 = vld [vmem:[#allocation2 + $0x168] sm:$0xff]
        %v477 = vld [vmem:[#allocation2 + $0x170] sm:$0xff]
        %v478 = vld [vmem:[#allocation2 + $0x178] sm:$0xff]
        %v479 = vld [vmem:[#allocation2 + $0x180] sm:$0xff]
        %v480 = vld [vmem:[#allocation2 + $0x188] sm:$0xff]
        %v481 = vld [vmem:[#allocation2 + $0x190] sm:$0xff]
        %v482 = vld [vmem:[#allocation2 + $0x198] sm:$0xff]
        %v483 = vld [vmem:[#allocation2 + $0x1a0] sm:$0xff]
        %v484 = vld [vmem:[#allocation2 + $0x1a8] sm:$0xff]
        %v485 = vld [vmem:[#allocation2 + $0x1b0] sm:$0xff]
        %v486 = vld [vmem:[#allocation2 + $0x1b8] sm:$0xff]
        %v487 = vld [vmem:[#allocation2 + $0x1c0] sm:$0xff]
        %v488 = vld [vmem:[#allocation2 + $0x1c8] sm:$0xff]
        %v489 = vld [vmem:[#allocation2 + $0x1d0] sm:$0xff]
        %v490 = vld [vmem:[#allocation2 + $0x1d8] sm:$0xff]
        %v491 = vld [vmem:[#allocation2 + $0x1e0] sm:$0xff]
        %v492 = vld [vmem:[#allocation2 + $0x1e8] sm:$0xff]
        %v493 = vld [vmem:[#allocation2 + $0x1f0] sm:$0xff]
        %v494 = vld [vmem:[#allocation2 + $0x1f8] sm:$0xff]
        %v495 = vld [vmem:[%s296] sm:$0xf]
        %v496 = vld [vmem:[%s296 + $0x4] sm:$0xf]
        %v497 = vld [vmem:[%s296 + $0x8] sm:$0xf]
        %v498 = vld [vmem:[%s296 + $0xc] sm:$0xf]
        %v499 = vld [vmem:[%s296 + $0x10] sm:$0xf]
        %v500 = vld [vmem:[%s296 + $0x14] sm:$0xf]
        %v501 = vld [vmem:[%s296 + $0x18] sm:$0xf]
        %v502 = vld [vmem:[%s296 + $0x1c] sm:$0xf]
        %v503 = vld [vmem:[%s296 + $0x20] sm:$0xf]
        %v504 = vld [vmem:[%s296 + $0x24] sm:$0xf]
        %v505 = vld [vmem:[%s296 + $0x28] sm:$0xf]
        %v506 = vld [vmem:[%s296 + $0x2c] sm:$0xf]
        %v507 = vld [vmem:[%s296 + $0x30] sm:$0xf]
        %v508 = vld [vmem:[%s296 + $0x34] sm:$0xf]
        %v509 = vld [vmem:[%s296 + $0x38] sm:$0xf]
        %v510 = vld [vmem:[%s296 + $0x3c] sm:$0xf]
        %v511 = vld [vmem:[%s296 + $0x40] sm:$0xf]
        %v512 = vld [vmem:[%s296 + $0x44] sm:$0xf]
        %v513 = vld [vmem:[%s296 + $0x48] sm:$0xf]
        %v514 = vld [vmem:[%s296 + $0x4c] sm:$0xf]
        %v515 = vld [vmem:[%s296 + $0x50] sm:$0xf]
        %v516 = vld [vmem:[%s296 + $0x54] sm:$0xf]
        %v517 = vld [vmem:[%s296 + $0x58] sm:$0xf]
        %v518 = vld [vmem:[%s296 + $0x5c] sm:$0xf]
        %v519 = vld [vmem:[%s296 + $0x60] sm:$0xf]
        %v520 = vld [vmem:[%s296 + $0x64] sm:$0xf]
        %v521 = vld [vmem:[%s296 + $0x68] sm:$0xf]
        %v522 = vld [vmem:[%s296 + $0x6c] sm:$0xf]
        %v523 = vld [vmem:[%s296 + $0x70] sm:$0xf]
        %v524 = vld [vmem:[%s296 + $0x74] sm:$0xf]
        %v525 = vld [vmem:[%s296 + $0x78] sm:$0xf]
        %v526 = vld [vmem:[%s296 + $0x7c] sm:$0xf]
        %v527 = vld [vmem:[%s296 + $0x80] sm:$0xf]
        %v528 = vld [vmem:[%s296 + $0x84] sm:$0xf]
        %v529 = vld [vmem:[%s296 + $0x88] sm:$0xf]
        %v530 = vld [vmem:[%s296 + $0x8c] sm:$0xf]
        %v531 = vld [vmem:[%s296 + $0x90] sm:$0xf]
        %v532 = vld [vmem:[%s296 + $0x94] sm:$0xf]
        %v533 = vld [vmem:[%s296 + $0x98] sm:$0xf]
        %v534 = vld [vmem:[%s296 + $0x9c] sm:$0xf]
        %v535 = vld [vmem:[%s296 + $0xa0] sm:$0xf]
        %v536 = vld [vmem:[%s296 + $0xa4] sm:$0xf]
        %v537 = vld [vmem:[%s296 + $0xa8] sm:$0xf]
        %v538 = vld [vmem:[%s296 + $0xac] sm:$0xf]
        %v539 = vld [vmem:[%s296 + $0xb0] sm:$0xf]
        %v540 = vld [vmem:[%s296 + $0xb4] sm:$0xf]
        %v541 = vld [vmem:[%s296 + $0xb8] sm:$0xf]
        %v542 = vld [vmem:[%s296 + $0xbc] sm:$0xf]
        %v543 = vld [vmem:[%s296 + $0xc0] sm:$0xf]
        %v544 = vld [vmem:[%s296 + $0xc4] sm:$0xf]
        %v545 = vld [vmem:[%s296 + $0xc8] sm:$0xf]
        %v546 = vld [vmem:[%s296 + $0xcc] sm:$0xf]
        %v547 = vld [vmem:[%s296 + $0xd0] sm:$0xf]
        %v548 = vld [vmem:[%s296 + $0xd4] sm:$0xf]
        %v549 = vld [vmem:[%s296 + $0xd8] sm:$0xf]
        %v550 = vld [vmem:[%s296 + $0xdc] sm:$0xf]
        %v551 = vld [vmem:[%s296 + $0xe0] sm:$0xf]
        %v552 = vld [vmem:[%s296 + $0xe4] sm:$0xf]
        %v553 = vld [vmem:[%s296 + $0xe8] sm:$0xf]
        %v554 = vld [vmem:[%s296 + $0xec] sm:$0xf]
        %v555 = vld [vmem:[%s296 + $0xf0] sm:$0xf]
        %v556 = vld [vmem:[%s296 + $0xf4] sm:$0xf]
        %v557 = vld [vmem:[%s296 + $0xf8] sm:$0xf]
        %v558 = vld [vmem:[%s296 + $0xfc] sm:$0xf]
        %v559 = vld [vmem:[%s305] sm:$0xf]
        %v560 = vld [vmem:[%s305 + $0x4] sm:$0xf]
        %v561 = vld [vmem:[%s305 + $0x8] sm:$0xf]
        %v562 = vld [vmem:[%s305 + $0xc] sm:$0xf]
        %v563 = vld [vmem:[%s305 + $0x10] sm:$0xf]
        %v564 = vld [vmem:[%s305 + $0x14] sm:$0xf]
        %v565 = vld [vmem:[%s305 + $0x18] sm:$0xf]
        %v566 = vld [vmem:[%s305 + $0x1c] sm:$0xf]
        %v567 = vld [vmem:[%s305 + $0x20] sm:$0xf]
        %v568 = vld [vmem:[%s305 + $0x24] sm:$0xf]
        %v569 = vld [vmem:[%s305 + $0x28] sm:$0xf]
        %v570 = vld [vmem:[%s305 + $0x2c] sm:$0xf]
        %v571 = vld [vmem:[%s305 + $0x30] sm:$0xf]
        %v572 = vld [vmem:[%s305 + $0x34] sm:$0xf]
        %v573 = vld [vmem:[%s305 + $0x38] sm:$0xf]
        %v574 = vld [vmem:[%s305 + $0x3c] sm:$0xf]
        %v639 = vunpack.c.l.b16 %v495
        %v640 = vunpack.c.l.b16 %v496
        %v641 = vunpack.c.l.b16 %v497
        %v642 = vunpack.c.l.b16 %v498
        %v643 = vunpack.c.l.b16 %v499
        %v644 = vunpack.c.l.b16 %v500
        %v645 = vunpack.c.l.b16 %v501
        %v646 = vunpack.c.l.b16 %v502
        %v647 = vunpack.c.l.b16 %v503
        %v648 = vunpack.c.l.b16 %v504
        %v649 = vunpack.c.l.b16 %v505
        %v650 = vunpack.c.l.b16 %v506
        %v651 = vunpack.c.l.b16 %v507
        %v652 = vunpack.c.l.b16 %v508
        %v653 = vunpack.c.l.b16 %v509
        %v654 = vunpack.c.l.b16 %v510
        %v655 = vunpack.c.l.b16 %v511
        %v656 = vunpack.c.l.b16 %v512
        %v657 = vunpack.c.l.b16 %v513
        %v658 = vunpack.c.l.b16 %v514
        %v659 = vunpack.c.l.b16 %v515
        %v660 = vunpack.c.l.b16 %v516
        %v661 = vunpack.c.l.b16 %v517
        %v662 = vunpack.c.l.b16 %v518
        %v663 = vunpack.c.l.b16 %v519
        %v664 = vunpack.c.l.b16 %v520
        %v665 = vunpack.c.l.b16 %v521
        %v666 = vunpack.c.l.b16 %v522
        %v667 = vunpack.c.l.b16 %v523
        %v668 = vunpack.c.l.b16 %v524
        %v669 = vunpack.c.l.b16 %v525
        %v670 = vunpack.c.l.b16 %v526
        %v671 = vunpack.c.l.b16 %v527
        %v672 = vunpack.c.l.b16 %v528
        %v673 = vunpack.c.l.b16 %v529
        %v674 = vunpack.c.l.b16 %v530
        %v675 = vunpack.c.l.b16 %v531
        %v676 = vunpack.c.l.b16 %v532
        %v677 = vunpack.c.l.b16 %v533
        %v678 = vunpack.c.l.b16 %v534
        %v679 = vunpack.c.l.b16 %v535
        %v680 = vunpack.c.l.b16 %v536
        %v681 = vunpack.c.l.b16 %v537
        %v682 = vunpack.c.l.b16 %v538
        %v683 = vunpack.c.l.b16 %v539
        %v684 = vunpack.c.l.b16 %v540
        %v685 = vunpack.c.l.b16 %v541
        %v686 = vunpack.c.l.b16 %v542
        %v687 = vunpack.c.l.b16 %v543
        %v688 = vunpack.c.l.b16 %v544
        %v689 = vunpack.c.l.b16 %v545
        %v690 = vunpack.c.l.b16 %v546
        %v691 = vunpack.c.l.b16 %v547
        %v692 = vunpack.c.l.b16 %v548
        %v693 = vunpack.c.l.b16 %v549
        %v694 = vunpack.c.l.b16 %v550
        %v695 = vunpack.c.l.b16 %v551
        %v696 = vunpack.c.l.b16 %v552
        %v697 = vunpack.c.l.b16 %v553
        %v698 = vunpack.c.l.b16 %v554
        %v699 = vunpack.c.l.b16 %v555
        %v700 = vunpack.c.l.b16 %v556
        %v701 = vunpack.c.l.b16 %v557
        %v702 = vunpack.c.l.b16 %v558
        %v703 = vpack.c.b16 %v640, %v639
        %v704 = vpack.c.b16 %v642, %v641
        %v705 = vpack.c.b16 %v644, %v643
        %v706 = vpack.c.b16 %v646, %v645
        %v707 = vpack.c.b16 %v648, %v647
        %v708 = vpack.c.b16 %v650, %v649
        %v709 = vpack.c.b16 %v652, %v651
        %v710 = vpack.c.b16 %v654, %v653
        %v711 = vpack.c.b16 %v656, %v655
        %v712 = vpack.c.b16 %v658, %v657
        %v713 = vpack.c.b16 %v660, %v659
        %v714 = vpack.c.b16 %v662, %v661
        %v715 = vpack.c.b16 %v664, %v663
        %v716 = vpack.c.b16 %v666, %v665
        %v717 = vpack.c.b16 %v668, %v667
        %v718 = vpack.c.b16 %v670, %v669
        %v719 = vpack.c.b16 %v672, %v671
        %v720 = vpack.c.b16 %v674, %v673
        %v721 = vpack.c.b16 %v676, %v675
        %v722 = vpack.c.b16 %v678, %v677
        %v723 = vpack.c.b16 %v680, %v679
        %v724 = vpack.c.b16 %v682, %v681
        %v725 = vpack.c.b16 %v684, %v683
        %v726 = vpack.c.b16 %v686, %v685
        %v727 = vpack.c.b16 %v688, %v687
        %v728 = vpack.c.b16 %v690, %v689
        %v729 = vpack.c.b16 %v692, %v691
        %v730 = vpack.c.b16 %v694, %v693
        %v731 = vpack.c.b16 %v696, %v695
        %v732 = vpack.c.b16 %v698, %v697
        %v733 = vpack.c.b16 %v700, %v699
        %v734 = vpack.c.b16 %v702, %v701
        %v783 = vunpack.c.l.b16 %v559
        %v784 = vunpack.c.l.b16 %v560
        %v785 = vunpack.c.l.b16 %v561
        %v786 = vunpack.c.l.b16 %v562
        %v787 = vunpack.c.l.b16 %v563
        %v788 = vunpack.c.l.b16 %v564
        %v789 = vunpack.c.l.b16 %v565
        %v790 = vunpack.c.l.b16 %v566
        %v791 = vunpack.c.l.b16 %v567
        %v792 = vunpack.c.l.b16 %v568
        %v793 = vunpack.c.l.b16 %v569
        %v794 = vunpack.c.l.b16 %v570
        %v795 = vunpack.c.l.b16 %v571
        %v796 = vunpack.c.l.b16 %v572
        %v797 = vunpack.c.l.b16 %v573
        %v798 = vunpack.c.l.b16 %v574
        %v799 = vpack.c.b16 %v784, %v783
        %v800 = vpack.c.b16 %v786, %v785
        %v801 = vpack.c.b16 %v788, %v787
        %v802 = vpack.c.b16 %v790, %v789
        %v803 = vpack.c.b16 %v792, %v791
        %v804 = vpack.c.b16 %v794, %v793
        %v805 = vpack.c.b16 %v796, %v795
        %v806 = vpack.c.b16 %v798, %v797
        %815 = vmatprep.subr.bf16.mxu0 0
        %816 = vmatpush1.bf16.msra.mxu0 %v806
        %817 = vmatprep.subr.bf16.mxu0 0
        %818 = vmatpush1.bf16.msra.mxu0 %v805
        %819 = vmatprep.subr.bf16.mxu0 0
        %820 = vmatpush1.bf16.msra.mxu0 %v804
        %821 = vmatprep.subr.bf16.mxu0 0
        %822 = vmatpush1.bf16.msra.mxu0 %v803
        %823 = vmatprep.subr.bf16.mxu0 0
        %824 = vmatpush1.bf16.msra.mxu0 %v802
        %825 = vmatprep.subr.bf16.mxu0 0
        %826 = vmatpush1.bf16.msra.mxu0 %v801
        %827 = vmatprep.subr.bf16.mxu0 0
        %828 = vmatpush1.bf16.msra.mxu0 %v800
        %829 = vmatprep.subr.bf16.mxu0 0
        %830 = vmatpush1.bf16.msra.mxu0 %v799
        %831 = vmatprep.subr.bf16.mxu0 0
        %832 = vmatpush2.bf16.msra.mxu0 0
        %833 = vmatprep.subr.bf16.mxu0 0
        %834 = vmatpush2.bf16.msra.mxu0 0
        %835 = vmatprep.subr.bf16.mxu0 0
        %836 = vmatpush2.bf16.msra.mxu0 0
        %837 = vmatprep.subr.bf16.mxu0 0
        %838 = vmatpush2.bf16.msra.mxu0 0
        %839 = vmatprep.subr.bf16.mxu0 0
        %840 = vmatpush2.bf16.msra.mxu0 0
        %841 = vmatprep.subr.bf16.mxu0 0
        %842 = vmatpush2.bf16.msra.mxu0 0
        %843 = vmatprep.subr.bf16.mxu0 0
        %844 = vmatpush2.bf16.msra.mxu0 0
        %845 = vmatprep.subr.bf16.mxu0 0
        %846 = vmatpush2.bf16.msra.mxu0 0
        %847 = vmatprep.mubr.bf16.mxu0 0
        %848 = vmatmul.mubr.bf16.gmra.mxu0 %v703
        %v849 = vpop.f32.mrf.mxu0
        %v850 = vadd.f32 0.0, %v849
        %v851 = vpop.f32.mrf.mxu0
        %v852 = vpop.f32.mrf.mxu0
        %v853 = vadd.f32 0.0, %v852
        %v854 = vpop.f32.mrf.mxu0
        %855 = vmatprep.mubr.bf16.mxu0 0
        %856 = vmatmul.mubr.bf16.gmra.mxu0 %v704
        %v857 = vpop.f32.mrf.mxu0
        %v858 = vadd.f32 0.0, %v857
        %v859 = vpop.f32.mrf.mxu0
        %v860 = vpop.f32.mrf.mxu0
        %v861 = vadd.f32 0.0, %v860
        %v862 = vpop.f32.mrf.mxu0
        %863 = vmatprep.mubr.bf16.mxu0 0
        %864 = vmatmul.mubr.bf16.gmra.mxu0 %v705
        %v865 = vpop.f32.mrf.mxu0
        %v866 = vadd.f32 0.0, %v865
        %v867 = vpop.f32.mrf.mxu0
        %v868 = vpop.f32.mrf.mxu0
        %v869 = vadd.f32 0.0, %v868
        %v870 = vpop.f32.mrf.mxu0
        %871 = vmatprep.mubr.bf16.mxu0 0
        %872 = vmatmul.mubr.bf16.gmra.mxu0 %v706
        %v873 = vpop.f32.mrf.mxu0
        %v874 = vadd.f32 0.0, %v873
        %v875 = vpop.f32.mrf.mxu0
        %v876 = vpop.f32.mrf.mxu0
        %v877 = vadd.f32 0.0, %v876
        %v878 = vpop.f32.mrf.mxu0
        %879 = vmatprep.mubr.bf16.mxu0 0
        %880 = vmatmul.mubr.bf16.gmra.mxu0 %v707
        %v881 = vpop.f32.mrf.mxu0
        %v882 = vadd.f32 0.0, %v881
        %v883 = vpop.f32.mrf.mxu0
        %v884 = vpop.f32.mrf.mxu0
        %v885 = vadd.f32 0.0, %v884
        %v886 = vpop.f32.mrf.mxu0
        %887 = vmatprep.mubr.bf16.mxu0 0
        %888 = vmatmul.mubr.bf16.gmra.mxu0 %v708
        %v889 = vpop.f32.mrf.mxu0
        %v890 = vadd.f32 0.0, %v889
        %v891 = vpop.f32.mrf.mxu0
        %v892 = vpop.f32.mrf.mxu0
        %v893 = vadd.f32 0.0, %v892
        %v894 = vpop.f32.mrf.mxu0
        %895 = vmatprep.mubr.bf16.mxu0 0
        %896 = vmatmul.mubr.bf16.gmra.mxu0 %v709
        %v897 = vpop.f32.mrf.mxu0
        %v898 = vadd.f32 0.0, %v897
        %v899 = vpop.f32.mrf.mxu0
        %v900 = vpop.f32.mrf.mxu0
        %v901 = vadd.f32 0.0, %v900
        %v902 = vpop.f32.mrf.mxu0
        %903 = vmatprep.mubr.bf16.mxu0 0
        %904 = vmatmul.mubr.bf16.gmra.mxu0 %v710
        %v905 = vpop.f32.mrf.mxu0
        %v906 = vadd.f32 0.0, %v905
        %v907 = vpop.f32.mrf.mxu0
        %v908 = vpop.f32.mrf.mxu0
        %v909 = vadd.f32 0.0, %v908
        %v910 = vpop.f32.mrf.mxu0
        %911 = vmatprep.mubr.bf16.mxu0 0
        %912 = vmatmul.mubr.bf16.gmra.mxu0 %v711
        %v913 = vpop.f32.mrf.mxu0
        %v914 = vadd.f32 0.0, %v913
        %v915 = vpop.f32.mrf.mxu0
        %v916 = vpop.f32.mrf.mxu0
        %v917 = vadd.f32 0.0, %v916
        %v918 = vpop.f32.mrf.mxu0
        %919 = vmatprep.mubr.bf16.mxu0 0
        %920 = vmatmul.mubr.bf16.gmra.mxu0 %v712
        %v921 = vpop.f32.mrf.mxu0
        %v922 = vadd.f32 0.0, %v921
        %v923 = vpop.f32.mrf.mxu0
        %v924 = vpop.f32.mrf.mxu0
        %v925 = vadd.f32 0.0, %v924
        %v926 = vpop.f32.mrf.mxu0
        %927 = vmatprep.mubr.bf16.mxu0 0
        %928 = vmatmul.mubr.bf16.gmra.mxu0 %v713
        %v929 = vpop.f32.mrf.mxu0
        %v930 = vadd.f32 0.0, %v929
        %v931 = vpop.f32.mrf.mxu0
        %v932 = vpop.f32.mrf.mxu0
        %v933 = vadd.f32 0.0, %v932
        %v934 = vpop.f32.mrf.mxu0
        %935 = vmatprep.mubr.bf16.mxu0 0
        %936 = vmatmul.mubr.bf16.gmra.mxu0 %v714
        %v937 = vpop.f32.mrf.mxu0
        %v938 = vadd.f32 0.0, %v937
        %v939 = vpop.f32.mrf.mxu0
        %v940 = vpop.f32.mrf.mxu0
        %v941 = vadd.f32 0.0, %v940
        %v942 = vpop.f32.mrf.mxu0
        %943 = vmatprep.mubr.bf16.mxu0 0
        %944 = vmatmul.mubr.bf16.gmra.mxu0 %v715
        %v945 = vpop.f32.mrf.mxu0
        %v946 = vadd.f32 0.0, %v945
        %v947 = vpop.f32.mrf.mxu0
        %v948 = vpop.f32.mrf.mxu0
        %v949 = vadd.f32 0.0, %v948
        %v950 = vpop.f32.mrf.mxu0
        %951 = vmatprep.mubr.bf16.mxu0 0
        %952 = vmatmul.mubr.bf16.gmra.mxu0 %v716
        %v953 = vpop.f32.mrf.mxu0
        %v954 = vadd.f32 0.0, %v953
        %v955 = vpop.f32.mrf.mxu0
        %v956 = vpop.f32.mrf.mxu0
        %v957 = vadd.f32 0.0, %v956
        %v958 = vpop.f32.mrf.mxu0
        %959 = vmatprep.mubr.bf16.mxu0 0
        %960 = vmatmul.mubr.bf16.gmra.mxu0 %v717
        %v961 = vpop.f32.mrf.mxu0
        %v962 = vadd.f32 0.0, %v961
        %v963 = vpop.f32.mrf.mxu0
        %v964 = vpop.f32.mrf.mxu0
        %v965 = vadd.f32 0.0, %v964
        %v966 = vpop.f32.mrf.mxu0
        %967 = vmatprep.mubr.bf16.mxu0 0
        %968 = vmatmul.mubr.bf16.gmra.mxu0 %v718
        %v969 = vpop.f32.mrf.mxu0
        %v970 = vadd.f32 0.0, %v969
        %v971 = vpop.f32.mrf.mxu0
        %v972 = vpop.f32.mrf.mxu0
        %v973 = vadd.f32 0.0, %v972
        %v974 = vpop.f32.mrf.mxu0
        %975 = vmatprep.mubr.bf16.mxu0 0
        %976 = vmatmul.mubr.bf16.gmra.mxu0 %v719
        %v977 = vpop.f32.mrf.mxu0
        %v978 = vadd.f32 0.0, %v977
        %v979 = vpop.f32.mrf.mxu0
        %v980 = vpop.f32.mrf.mxu0
        %v981 = vadd.f32 0.0, %v980
        %v982 = vpop.f32.mrf.mxu0
        %983 = vmatprep.mubr.bf16.mxu0 0
        %984 = vmatmul.mubr.bf16.gmra.mxu0 %v720
        %v985 = vpop.f32.mrf.mxu0
        %v986 = vadd.f32 0.0, %v985
        %v987 = vpop.f32.mrf.mxu0
        %v988 = vpop.f32.mrf.mxu0
        %v989 = vadd.f32 0.0, %v988
        %v990 = vpop.f32.mrf.mxu0
        %991 = vmatprep.mubr.bf16.mxu0 0
        %992 = vmatmul.mubr.bf16.gmra.mxu0 %v721
        %v993 = vpop.f32.mrf.mxu0
        %v994 = vadd.f32 0.0, %v993
        %v995 = vpop.f32.mrf.mxu0
        %v996 = vpop.f32.mrf.mxu0
        %v997 = vadd.f32 0.0, %v996
        %v998 = vpop.f32.mrf.mxu0
        %999 = vmatprep.mubr.bf16.mxu0 0
        %1000 = vmatmul.mubr.bf16.gmra.mxu0 %v722
        %v1001 = vpop.f32.mrf.mxu0
        %v1002 = vadd.f32 0.0, %v1001
        %v1003 = vpop.f32.mrf.mxu0
        %v1004 = vpop.f32.mrf.mxu0
        %v1005 = vadd.f32 0.0, %v1004
        %v1006 = vpop.f32.mrf.mxu0
        %1007 = vmatprep.mubr.bf16.mxu0 0
        %1008 = vmatmul.mubr.bf16.gmra.mxu0 %v723
        %v1009 = vpop.f32.mrf.mxu0
        %v1010 = vadd.f32 0.0, %v1009
        %v1011 = vpop.f32.mrf.mxu0
        %v1012 = vpop.f32.mrf.mxu0
        %v1013 = vadd.f32 0.0, %v1012
        %v1014 = vpop.f32.mrf.mxu0
        %1015 = vmatprep.mubr.bf16.mxu0 0
        %1016 = vmatmul.mubr.bf16.gmra.mxu0 %v724
        %v1017 = vpop.f32.mrf.mxu0
        %v1018 = vadd.f32 0.0, %v1017
        %v1019 = vpop.f32.mrf.mxu0
        %v1020 = vpop.f32.mrf.mxu0
        %v1021 = vadd.f32 0.0, %v1020
        %v1022 = vpop.f32.mrf.mxu0
        %1023 = vmatprep.mubr.bf16.mxu0 0
        %1024 = vmatmul.mubr.bf16.gmra.mxu0 %v725
        %v1025 = vpop.f32.mrf.mxu0
        %v1026 = vadd.f32 0.0, %v1025
        %v1027 = vpop.f32.mrf.mxu0
        %v1028 = vpop.f32.mrf.mxu0
        %v1029 = vadd.f32 0.0, %v1028
        %v1030 = vpop.f32.mrf.mxu0
        %1031 = vmatprep.mubr.bf16.mxu0 0
        %1032 = vmatmul.mubr.bf16.gmra.mxu0 %v726
        %v1033 = vpop.f32.mrf.mxu0
        %v1034 = vadd.f32 0.0, %v1033
        %v1035 = vpop.f32.mrf.mxu0
        %v1036 = vpop.f32.mrf.mxu0
        %v1037 = vadd.f32 0.0, %v1036
        %v1038 = vpop.f32.mrf.mxu0
        %1039 = vmatprep.mubr.bf16.mxu0 0
        %1040 = vmatmul.mubr.bf16.gmra.mxu0 %v727
        %v1041 = vpop.f32.mrf.mxu0
        %v1042 = vadd.f32 0.0, %v1041
        %v1043 = vpop.f32.mrf.mxu0
        %v1044 = vpop.f32.mrf.mxu0
        %v1045 = vadd.f32 0.0, %v1044
        %v1046 = vpop.f32.mrf.mxu0
        %1047 = vmatprep.mubr.bf16.mxu0 0
        %1048 = vmatmul.mubr.bf16.gmra.mxu0 %v728
        %v1049 = vpop.f32.mrf.mxu0
        %v1050 = vadd.f32 0.0, %v1049
        %v1051 = vpop.f32.mrf.mxu0
        %v1052 = vpop.f32.mrf.mxu0
        %v1053 = vadd.f32 0.0, %v1052
        %v1054 = vpop.f32.mrf.mxu0
        %1055 = vmatprep.mubr.bf16.mxu0 0
        %1056 = vmatmul.mubr.bf16.gmra.mxu0 %v729
        %v1057 = vpop.f32.mrf.mxu0
        %v1058 = vadd.f32 0.0, %v1057
        %v1059 = vpop.f32.mrf.mxu0
        %v1060 = vpop.f32.mrf.mxu0
        %v1061 = vadd.f32 0.0, %v1060
        %v1062 = vpop.f32.mrf.mxu0
        %1063 = vmatprep.mubr.bf16.mxu0 0
        %1064 = vmatmul.mubr.bf16.gmra.mxu0 %v730
        %v1065 = vpop.f32.mrf.mxu0
        %v1066 = vadd.f32 0.0, %v1065
        %v1067 = vpop.f32.mrf.mxu0
        %v1068 = vpop.f32.mrf.mxu0
        %v1069 = vadd.f32 0.0, %v1068
        %v1070 = vpop.f32.mrf.mxu0
        %1071 = vmatprep.mubr.bf16.mxu0 0
        %1072 = vmatmul.mubr.bf16.gmra.mxu0 %v731
        %v1073 = vpop.f32.mrf.mxu0
        %v1074 = vadd.f32 0.0, %v1073
        %v1075 = vpop.f32.mrf.mxu0
        %v1076 = vpop.f32.mrf.mxu0
        %v1077 = vadd.f32 0.0, %v1076
        %v1078 = vpop.f32.mrf.mxu0
        %1079 = vmatprep.mubr.bf16.mxu0 0
        %1080 = vmatmul.mubr.bf16.gmra.mxu0 %v732
        %v1081 = vpop.f32.mrf.mxu0
        %v1082 = vadd.f32 0.0, %v1081
        %v1083 = vpop.f32.mrf.mxu0
        %v1084 = vpop.f32.mrf.mxu0
        %v1085 = vadd.f32 0.0, %v1084
        %v1086 = vpop.f32.mrf.mxu0
        %1087 = vmatprep.mubr.bf16.mxu0 0
        %1088 = vmatmul.mubr.bf16.gmra.mxu0 %v733
        %v1089 = vpop.f32.mrf.mxu0
        %v1090 = vadd.f32 0.0, %v1089
        %v1091 = vpop.f32.mrf.mxu0
        %v1092 = vpop.f32.mrf.mxu0
        %v1093 = vadd.f32 0.0, %v1092
        %v1094 = vpop.f32.mrf.mxu0
        %1095 = vmatprep.mubr.bf16.mxu0 0
        %1096 = vmatmul.mubr.bf16.gmra.mxu0 %v734
        %v1097 = vpop.f32.mrf.mxu0
        %v1098 = vadd.f32 0.0, %v1097
        %v1099 = vpop.f32.mrf.mxu0
        %v1100 = vpop.f32.mrf.mxu0
        %v1101 = vadd.f32 0.0, %v1100
        %v1102 = vpop.f32.mrf.mxu0
        %1103 = vdwg.mxu0
        %v1104 = vadd.f32 %v431, %v850
        %v1105 = vadd.f32 %v432, %v853
        %v1106 = vadd.f32 %v433, %v858
        %v1107 = vadd.f32 %v434, %v861
        %v1108 = vadd.f32 %v435, %v866
        %v1109 = vadd.f32 %v436, %v869
        %v1110 = vadd.f32 %v437, %v874
        %v1111 = vadd.f32 %v438, %v877
        %v1112 = vadd.f32 %v439, %v882
        %v1113 = vadd.f32 %v440, %v885
        %v1114 = vadd.f32 %v441, %v890
        %v1115 = vadd.f32 %v442, %v893
        %v1116 = vadd.f32 %v443, %v898
        %v1117 = vadd.f32 %v444, %v901
        %v1118 = vadd.f32 %v445, %v906
        %v1119 = vadd.f32 %v446, %v909
        %v1120 = vadd.f32 %v447, %v914
        %v1121 = vadd.f32 %v448, %v917
        %v1122 = vadd.f32 %v449, %v922
        %v1123 = vadd.f32 %v450, %v925
        %v1124 = vadd.f32 %v451, %v930
        %v1125 = vadd.f32 %v452, %v933
        %v1126 = vadd.f32 %v453, %v938
        %v1127 = vadd.f32 %v454, %v941
        %v1128 = vadd.f32 %v455, %v946
        %v1129 = vadd.f32 %v456, %v949
        %v1130 = vadd.f32 %v457, %v954
        %v1131 = vadd.f32 %v458, %v957
        %v1132 = vadd.f32 %v459, %v962
        %v1133 = vadd.f32 %v460, %v965
        %v1134 = vadd.f32 %v461, %v970
        %v1135 = vadd.f32 %v462, %v973
        %v1136 = vadd.f32 %v463, %v978
        %v1137 = vadd.f32 %v464, %v981
        %v1138 = vadd.f32 %v465, %v986
        %v1139 = vadd.f32 %v466, %v989
        %v1140 = vadd.f32 %v467, %v994
        %v1141 = vadd.f32 %v468, %v997
        %v1142 = vadd.f32 %v469, %v1002
        %v1143 = vadd.f32 %v470, %v1005
        %v1144 = vadd.f32 %v471, %v1010
        %v1145 = vadd.f32 %v472, %v1013
        %v1146 = vadd.f32 %v473, %v1018
        %v1147 = vadd.f32 %v474, %v1021
        %v1148 = vadd.f32 %v475, %v1026
        %v1149 = vadd.f32 %v476, %v1029
        %v1150 = vadd.f32 %v477, %v1034
        %v1151 = vadd.f32 %v478, %v1037
        %v1152 = vadd.f32 %v479, %v1042
        %v1153 = vadd.f32 %v480, %v1045
        %v1154 = vadd.f32 %v481, %v1050
        %v1155 = vadd.f32 %v482, %v1053
        %v1156 = vadd.f32 %v483, %v1058
        %v1157 = vadd.f32 %v484, %v1061
        %v1158 = vadd.f32 %v485, %v1066
        %v1159 = vadd.f32 %v486, %v1069
        %v1160 = vadd.f32 %v487, %v1074
        %v1161 = vadd.f32 %v488, %v1077
        %v1162 = vadd.f32 %v489, %v1082
        %v1163 = vadd.f32 %v490, %v1085
        %v1164 = vadd.f32 %v491, %v1090
        %v1165 = vadd.f32 %v492, %v1093
        %v1166 = vadd.f32 %v493, %v1098
        %v1167 = vadd.f32 %v494, %v1101
        %1168 = vst [vmem:[#allocation2] sm:$0xff] %v1104
        %1169 = vst [vmem:[#allocation2 + $0x8] sm:$0xff] %v1105
        %1170 = vst [vmem:[#allocation2 + $0x10] sm:$0xff] %v1106
        %1171 = vst [vmem:[#allocation2 + $0x18] sm:$0xff] %v1107
        %1172 = vst [vmem:[#allocation2 + $0x20] sm:$0xff] %v1108
        %1173 = vst [vmem:[#allocation2 + $0x28] sm:$0xff] %v1109
        %1174 = vst [vmem:[#allocation2 + $0x30] sm:$0xff] %v1110
        %1175 = vst [vmem:[#allocation2 + $0x38] sm:$0xff] %v1111
        %1176 = vst [vmem:[#allocation2 + $0x40] sm:$0xff] %v1112
        %1177 = vst [vmem:[#allocation2 + $0x48] sm:$0xff] %v1113
        %1178 = vst [vmem:[#allocation2 + $0x50] sm:$0xff] %v1114
        %1179 = vst [vmem:[#allocation2 + $0x58] sm:$0xff] %v1115
        %1180 = vst [vmem:[#allocation2 + $0x60] sm:$0xff] %v1116
        %1181 = vst [vmem:[#allocation2 + $0x68] sm:$0xff] %v1117
        %1182 = vst [vmem:[#allocation2 + $0x70] sm:$0xff] %v1118
        %1183 = vst [vmem:[#allocation2 + $0x78] sm:$0xff] %v1119
        %1184 = vst [vmem:[#allocation2 + $0x80] sm:$0xff] %v1120
        %1185 = vst [vmem:[#allocation2 + $0x88] sm:$0xff] %v1121
        %1186 = vst [vmem:[#allocation2 + $0x90] sm:$0xff] %v1122
        %1187 = vst [vmem:[#allocation2 + $0x98] sm:$0xff] %v1123
        %1188 = vst [vmem:[#allocation2 + $0xa0] sm:$0xff] %v1124
        %1189 = vst [vmem:[#allocation2 + $0xa8] sm:$0xff] %v1125
        %1190 = vst [vmem:[#allocation2 + $0xb0] sm:$0xff] %v1126
        %1191 = vst [vmem:[#allocation2 + $0xb8] sm:$0xff] %v1127
        %1192 = vst [vmem:[#allocation2 + $0xc0] sm:$0xff] %v1128
        %1193 = vst [vmem:[#allocation2 + $0xc8] sm:$0xff] %v1129
        %1194 = vst [vmem:[#allocation2 + $0xd0] sm:$0xff] %v1130
        %1195 = vst [vmem:[#allocation2 + $0xd8] sm:$0xff] %v1131
        %1196 = vst [vmem:[#allocation2 + $0xe0] sm:$0xff] %v1132
        %1197 = vst [vmem:[#allocation2 + $0xe8] sm:$0xff] %v1133
        %1198 = vst [vmem:[#allocation2 + $0xf0] sm:$0xff] %v1134
        %1199 = vst [vmem:[#allocation2 + $0xf8] sm:$0xff] %v1135
        %1200 = vst [vmem:[#allocation2 + $0x100] sm:$0xff] %v1136
        %1201 = vst [vmem:[#allocation2 + $0x108] sm:$0xff] %v1137
        %1202 = vst [vmem:[#allocation2 + $0x110] sm:$0xff] %v1138
        %1203 = vst [vmem:[#allocation2 + $0x118] sm:$0xff] %v1139
        %1204 = vst [vmem:[#allocation2 + $0x120] sm:$0xff] %v1140
        %1205 = vst [vmem:[#allocation2 + $0x128] sm:$0xff] %v1141
        %1206 = vst [vmem:[#allocation2 + $0x130] sm:$0xff] %v1142
        %1207 = vst [vmem:[#allocation2 + $0x138] sm:$0xff] %v1143
        %1208 = vst [vmem:[#allocation2 + $0x140] sm:$0xff] %v1144
        %1209 = vst [vmem:[#allocation2 + $0x148] sm:$0xff] %v1145
        %1210 = vst [vmem:[#allocation2 + $0x150] sm:$0xff] %v1146
        %1211 = vst [vmem:[#allocation2 + $0x158] sm:$0xff] %v1147
        %1212 = vst [vmem:[#allocation2 + $0x160] sm:$0xff] %v1148
        %1213 = vst [vmem:[#allocation2 + $0x168] sm:$0xff] %v1149
        %1214 = vst [vmem:[#allocation2 + $0x170] sm:$0xff] %v1150
        %1215 = vst [vmem:[#allocation2 + $0x178] sm:$0xff] %v1151
        %1216 = vst [vmem:[#allocation2 + $0x180] sm:$0xff] %v1152
        %1217 = vst [vmem:[#allocation2 + $0x188] sm:$0xff] %v1153
        %1218 = vst [vmem:[#allocation2 + $0x190] sm:$0xff] %v1154
        %1219 = vst [vmem:[#allocation2 + $0x198] sm:$0xff] %v1155
        %1220 = vst [vmem:[#allocation2 + $0x1a0] sm:$0xff] %v1156
        %1221 = vst [vmem:[#allocation2 + $0x1a8] sm:$0xff] %v1157
        %1222 = vst [vmem:[#allocation2 + $0x1b0] sm:$0xff] %v1158
        %1223 = vst [vmem:[#allocation2 + $0x1b8] sm:$0xff] %v1159
        %1224 = vst [vmem:[#allocation2 + $0x1c0] sm:$0xff] %v1160
        %1225 = vst [vmem:[#allocation2 + $0x1c8] sm:$0xff] %v1161
        %1226 = vst [vmem:[#allocation2 + $0x1d0] sm:$0xff] %v1162
        %1227 = vst [vmem:[#allocation2 + $0x1d8] sm:$0xff] %v1163
        %1228 = vst [vmem:[#allocation2 + $0x1e0] sm:$0xff] %v1164
        %1229 = vst [vmem:[#allocation2 + $0x1e8] sm:$0xff] %v1165
        %1230 = vst [vmem:[#allocation2 + $0x1f0] sm:$0xff] %v1166
        %1231 = vst [vmem:[#allocation2 + $0x1f8] sm:$0xff] %v1167
        // Predicated region
        $region53: #{tpu_custom_call.1} parent=35 // pred_check
          %p1232 = pneg %p363
        $region54: #{tpu_custom_call.1} parent=35 // pred_check_branch
          %1234 = sbr.rel (%p1232) target = $region56
        $region55: #{tpu_custom_call.1} parent=35 // pred_region
          %v1235 = vld [vmem:[#allocation2] sm:$0xff]
          %v1236 = vld [vmem:[#allocation2 + $0x8] sm:$0xff]
          %v1237 = vld [vmem:[#allocation2 + $0x10] sm:$0xff]
          %v1238 = vld [vmem:[#allocation2 + $0x18] sm:$0xff]
          %v1239 = vld [vmem:[#allocation2 + $0x20] sm:$0xff]
          %v1240 = vld [vmem:[#allocation2 + $0x28] sm:$0xff]
          %v1241 = vld [vmem:[#allocation2 + $0x30] sm:$0xff]
          %v1242 = vld [vmem:[#allocation2 + $0x38] sm:$0xff]
          %v1243 = vld [vmem:[#allocation2 + $0x40] sm:$0xff]
          %v1244 = vld [vmem:[#allocation2 + $0x48] sm:$0xff]
          %v1245 = vld [vmem:[#allocation2 + $0x50] sm:$0xff]
          %v1246 = vld [vmem:[#allocation2 + $0x58] sm:$0xff]
          %v1247 = vld [vmem:[#allocation2 + $0x60] sm:$0xff]
          %v1248 = vld [vmem:[#allocation2 + $0x68] sm:$0xff]
          %v1249 = vld [vmem:[#allocation2 + $0x70] sm:$0xff]
          %v1250 = vld [vmem:[#allocation2 + $0x78] sm:$0xff]
          %v1251 = vld [vmem:[#allocation2 + $0x80] sm:$0xff]
          %v1252 = vld [vmem:[#allocation2 + $0x88] sm:$0xff]
          %v1253 = vld [vmem:[#allocation2 + $0x90] sm:$0xff]
          %v1254 = vld [vmem:[#allocation2 + $0x98] sm:$0xff]
          %v1255 = vld [vmem:[#allocation2 + $0xa0] sm:$0xff]
          %v1256 = vld [vmem:[#allocation2 + $0xa8] sm:$0xff]
          %v1257 = vld [vmem:[#allocation2 + $0xb0] sm:$0xff]
          %v1258 = vld [vmem:[#allocation2 + $0xb8] sm:$0xff]
          %v1259 = vld [vmem:[#allocation2 + $0xc0] sm:$0xff]
          %v1260 = vld [vmem:[#allocation2 + $0xc8] sm:$0xff]
          %v1261 = vld [vmem:[#allocation2 + $0xd0] sm:$0xff]
          %v1262 = vld [vmem:[#allocation2 + $0xd8] sm:$0xff]
          %v1263 = vld [vmem:[#allocation2 + $0xe0] sm:$0xff]
          %v1264 = vld [vmem:[#allocation2 + $0xe8] sm:$0xff]
          %v1265 = vld [vmem:[#allocation2 + $0xf0] sm:$0xff]
          %v1266 = vld [vmem:[#allocation2 + $0xf8] sm:$0xff]
          %v1267 = vld [vmem:[#allocation2 + $0x100] sm:$0xff]
          %v1268 = vld [vmem:[#allocation2 + $0x108] sm:$0xff]
          %v1269 = vld [vmem:[#allocation2 + $0x110] sm:$0xff]
          %v1270 = vld [vmem:[#allocation2 + $0x118] sm:$0xff]
          %v1271 = vld [vmem:[#allocation2 + $0x120] sm:$0xff]
          %v1272 = vld [vmem:[#allocation2 + $0x128] sm:$0xff]
          %v1273 = vld [vmem:[#allocation2 + $0x130] sm:$0xff]
          %v1274 = vld [vmem:[#allocation2 + $0x138] sm:$0xff]
          %v1275 = vld [vmem:[#allocation2 + $0x140] sm:$0xff]
          %v1276 = vld [vmem:[#allocation2 + $0x148] sm:$0xff]
          %v1277 = vld [vmem:[#allocation2 + $0x150] sm:$0xff]
          %v1278 = vld [vmem:[#allocation2 + $0x158] sm:$0xff]
          %v1279 = vld [vmem:[#allocation2 + $0x160] sm:$0xff]
          %v1280 = vld [vmem:[#allocation2 + $0x168] sm:$0xff]
          %v1281 = vld [vmem:[#allocation2 + $0x170] sm:$0xff]
          %v1282 = vld [vmem:[#allocation2 + $0x178] sm:$0xff]
          %v1283 = vld [vmem:[#allocation2 + $0x180] sm:$0xff]
          %v1284 = vld [vmem:[#allocation2 + $0x188] sm:$0xff]
          %v1285 = vld [vmem:[#allocation2 + $0x190] sm:$0xff]
          %v1286 = vld [vmem:[#allocation2 + $0x198] sm:$0xff]
          %v1287 = vld [vmem:[#allocation2 + $0x1a0] sm:$0xff]
          %v1288 = vld [vmem:[#allocation2 + $0x1a8] sm:$0xff]
          %v1289 = vld [vmem:[#allocation2 + $0x1b0] sm:$0xff]
          %v1290 = vld [vmem:[#allocation2 + $0x1b8] sm:$0xff]
          %v1291 = vld [vmem:[#allocation2 + $0x1c0] sm:$0xff]
          %v1292 = vld [vmem:[#allocation2 + $0x1c8] sm:$0xff]
          %v1293 = vld [vmem:[#allocation2 + $0x1d0] sm:$0xff]
          %v1294 = vld [vmem:[#allocation2 + $0x1d8] sm:$0xff]
          %v1295 = vld [vmem:[#allocation2 + $0x1e0] sm:$0xff]
          %v1296 = vld [vmem:[#allocation2 + $0x1e8] sm:$0xff]
          %v1297 = vld [vmem:[#allocation2 + $0x1f0] sm:$0xff]
          %v1298 = vld [vmem:[#allocation2 + $0x1f8] sm:$0xff]
          %v1299 = vld [vmem:[%s360] sm:$0x1]
          %v1301 = vlaneseq
          %v1302 = vshrl.u32 %v1301, 7
          %v1303 = vsub.s32 0, %v1302
          %v1304 = vrot.slane %v1299, %v1303
          %v1306 = vmul.f32 %v1235, %v1304
          %v1307 = vmul.f32 %v1236, %v1304
          %v1308 = vmul.f32 %v1237, %v1304
          %v1309 = vmul.f32 %v1238, %v1304
          %v1310 = vmul.f32 %v1239, %v1304
          %v1311 = vmul.f32 %v1240, %v1304
          %v1312 = vmul.f32 %v1241, %v1304
          %v1313 = vmul.f32 %v1242, %v1304
          %v1314 = vmul.f32 %v1243, %v1304
          %v1315 = vmul.f32 %v1244, %v1304
          %v1316 = vmul.f32 %v1245, %v1304
          %v1317 = vmul.f32 %v1246, %v1304
          %v1318 = vmul.f32 %v1247, %v1304
          %v1319 = vmul.f32 %v1248, %v1304
          %v1320 = vmul.f32 %v1249, %v1304
          %v1321 = vmul.f32 %v1250, %v1304
          %v1322 = vmul.f32 %v1251, %v1304
          %v1323 = vmul.f32 %v1252, %v1304
          %v1324 = vmul.f32 %v1253, %v1304
          %v1325 = vmul.f32 %v1254, %v1304
          %v1326 = vmul.f32 %v1255, %v1304
          %v1327 = vmul.f32 %v1256, %v1304
          %v1328 = vmul.f32 %v1257, %v1304
          %v1329 = vmul.f32 %v1258, %v1304
          %v1330 = vmul.f32 %v1259, %v1304
          %v1331 = vmul.f32 %v1260, %v1304
          %v1332 = vmul.f32 %v1261, %v1304
          %v1333 = vmul.f32 %v1262, %v1304
          %v1334 = vmul.f32 %v1263, %v1304
          %v1335 = vmul.f32 %v1264, %v1304
          %v1336 = vmul.f32 %v1265, %v1304
          %v1337 = vmul.f32 %v1266, %v1304
          %v1338 = vmul.f32 %v1267, %v1304
          %v1339 = vmul.f32 %v1268, %v1304
          %v1340 = vmul.f32 %v1269, %v1304
          %v1341 = vmul.f32 %v1270, %v1304
          %v1342 = vmul.f32 %v1271, %v1304
          %v1343 = vmul.f32 %v1272, %v1304
          %v1344 = vmul.f32 %v1273, %v1304
          %v1345 = vmul.f32 %v1274, %v1304
          %v1346 = vmul.f32 %v1275, %v1304
          %v1347 = vmul.f32 %v1276, %v1304
          %v1348 = vmul.f32 %v1277, %v1304
          %v1349 = vmul.f32 %v1278, %v1304
          %v1350 = vmul.f32 %v1279, %v1304
          %v1351 = vmul.f32 %v1280, %v1304
          %v1352 = vmul.f32 %v1281, %v1304
          %v1353 = vmul.f32 %v1282, %v1304
          %v1354 = vmul.f32 %v1283, %v1304
          %v1355 = vmul.f32 %v1284, %v1304
          %v1356 = vmul.f32 %v1285, %v1304
          %v1357 = vmul.f32 %v1286, %v1304
          %v1358 = vmul.f32 %v1287, %v1304
          %v1359 = vmul.f32 %v1288, %v1304
          %v1360 = vmul.f32 %v1289, %v1304
          %v1361 = vmul.f32 %v1290, %v1304
          %v1362 = vmul.f32 %v1291, %v1304
          %v1363 = vmul.f32 %v1292, %v1304
          %v1364 = vmul.f32 %v1293, %v1304
          %v1365 = vmul.f32 %v1294, %v1304
          %v1366 = vmul.f32 %v1295, %v1304
          %v1367 = vmul.f32 %v1296, %v1304
          %v1368 = vmul.f32 %v1297, %v1304
          %v1369 = vmul.f32 %v1298, %v1304
          %v1370 = vld [vmem:[%s313] sm:$0x1]
          %v1372 = vlaneseq
          %v1373 = vshrl.u32 %v1372, 7
          %v1374 = vsub.s32 0, %v1373
          %v1375 = vrot.slane %v1370, %v1374
          %v1377 = vadd.f32 %v1306, %v1375
          %v1378 = vadd.f32 %v1307, %v1375
          %v1379 = vadd.f32 %v1308, %v1375
          %v1380 = vadd.f32 %v1309, %v1375
          %v1381 = vadd.f32 %v1310, %v1375
          %v1382 = vadd.f32 %v1311, %v1375
          %v1383 = vadd.f32 %v1312, %v1375
          %v1384 = vadd.f32 %v1313, %v1375
          %v1385 = vadd.f32 %v1314, %v1375
          %v1386 = vadd.f32 %v1315, %v1375
          %v1387 = vadd.f32 %v1316, %v1375
          %v1388 = vadd.f32 %v1317, %v1375
          %v1389 = vadd.f32 %v1318, %v1375
          %v1390 = vadd.f32 %v1319, %v1375
          %v1391 = vadd.f32 %v1320, %v1375
          %v1392 = vadd.f32 %v1321, %v1375
          %v1393 = vadd.f32 %v1322, %v1375
          %v1394 = vadd.f32 %v1323, %v1375
          %v1395 = vadd.f32 %v1324, %v1375
          %v1396 = vadd.f32 %v1325, %v1375
          %v1397 = vadd.f32 %v1326, %v1375
          %v1398 = vadd.f32 %v1327, %v1375
          %v1399 = vadd.f32 %v1328, %v1375
          %v1400 = vadd.f32 %v1329, %v1375
          %v1401 = vadd.f32 %v1330, %v1375
          %v1402 = vadd.f32 %v1331, %v1375
          %v1403 = vadd.f32 %v1332, %v1375
          %v1404 = vadd.f32 %v1333, %v1375
          %v1405 = vadd.f32 %v1334, %v1375
          %v1406 = vadd.f32 %v1335, %v1375
          %v1407 = vadd.f32 %v1336, %v1375
          %v1408 = vadd.f32 %v1337, %v1375
          %v1409 = vadd.f32 %v1338, %v1375
          %v1410 = vadd.f32 %v1339, %v1375
          %v1411 = vadd.f32 %v1340, %v1375
          %v1412 = vadd.f32 %v1341, %v1375
          %v1413 = vadd.f32 %v1342, %v1375
          %v1414 = vadd.f32 %v1343, %v1375
          %v1415 = vadd.f32 %v1344, %v1375
          %v1416 = vadd.f32 %v1345, %v1375
          %v1417 = vadd.f32 %v1346, %v1375
          %v1418 = vadd.f32 %v1347, %v1375
          %v1419 = vadd.f32 %v1348, %v1375
          %v1420 = vadd.f32 %v1349, %v1375
          %v1421 = vadd.f32 %v1350, %v1375
          %v1422 = vadd.f32 %v1351, %v1375
          %v1423 = vadd.f32 %v1352, %v1375
          %v1424 = vadd.f32 %v1353, %v1375
          %v1425 = vadd.f32 %v1354, %v1375
          %v1426 = vadd.f32 %v1355, %v1375
          %v1427 = vadd.f32 %v1356, %v1375
          %v1428 = vadd.f32 %v1357, %v1375
          %v1429 = vadd.f32 %v1358, %v1375
          %v1430 = vadd.f32 %v1359, %v1375
          %v1431 = vadd.f32 %v1360, %v1375
          %v1432 = vadd.f32 %v1361, %v1375
          %v1433 = vadd.f32 %v1362, %v1375
          %v1434 = vadd.f32 %v1363, %v1375
          %v1435 = vadd.f32 %v1364, %v1375
          %v1436 = vadd.f32 %v1365, %v1375
          %v1437 = vadd.f32 %v1366, %v1375
          %v1438 = vadd.f32 %v1367, %v1375
          %v1439 = vadd.f32 %v1368, %v1375
          %v1440 = vadd.f32 %v1369, %v1375
          %v1441 = vmax.f32 %v1377, 0.0
          %v1442 = vmax.f32 %v1378, 0.0
          %v1443 = vmax.f32 %v1379, 0.0
          %v1444 = vmax.f32 %v1380, 0.0
          %v1445 = vmax.f32 %v1381, 0.0
          %v1446 = vmax.f32 %v1382, 0.0
          %v1447 = vmax.f32 %v1383, 0.0
          %v1448 = vmax.f32 %v1384, 0.0
          %v1449 = vmax.f32 %v1385, 0.0
          %v1450 = vmax.f32 %v1386, 0.0
          %v1451 = vmax.f32 %v1387, 0.0
          %v1452 = vmax.f32 %v1388, 0.0
          %v1453 = vmax.f32 %v1389, 0.0
          %v1454 = vmax.f32 %v1390, 0.0
          %v1455 = vmax.f32 %v1391, 0.0
          %v1456 = vmax.f32 %v1392, 0.0
          %v1457 = vmax.f32 %v1393, 0.0
          %v1458 = vmax.f32 %v1394, 0.0
          %v1459 = vmax.f32 %v1395, 0.0
          %v1460 = vmax.f32 %v1396, 0.0
          %v1461 = vmax.f32 %v1397, 0.0
          %v1462 = vmax.f32 %v1398, 0.0
          %v1463 = vmax.f32 %v1399, 0.0
          %v1464 = vmax.f32 %v1400, 0.0
          %v1465 = vmax.f32 %v1401, 0.0
          %v1466 = vmax.f32 %v1402, 0.0
          %v1467 = vmax.f32 %v1403, 0.0
          %v1468 = vmax.f32 %v1404, 0.0
          %v1469 = vmax.f32 %v1405, 0.0
          %v1470 = vmax.f32 %v1406, 0.0
          %v1471 = vmax.f32 %v1407, 0.0
          %v1472 = vmax.f32 %v1408, 0.0
          %v1473 = vmax.f32 %v1409, 0.0
          %v1474 = vmax.f32 %v1410, 0.0
          %v1475 = vmax.f32 %v1411, 0.0
          %v1476 = vmax.f32 %v1412, 0.0
          %v1477 = vmax.f32 %v1413, 0.0
          %v1478 = vmax.f32 %v1414, 0.0
          %v1479 = vmax.f32 %v1415, 0.0
          %v1480 = vmax.f32 %v1416, 0.0
          %v1481 = vmax.f32 %v1417, 0.0
          %v1482 = vmax.f32 %v1418, 0.0
          %v1483 = vmax.f32 %v1419, 0.0
          %v1484 = vmax.f32 %v1420, 0.0
          %v1485 = vmax.f32 %v1421, 0.0
          %v1486 = vmax.f32 %v1422, 0.0
          %v1487 = vmax.f32 %v1423, 0.0
          %v1488 = vmax.f32 %v1424, 0.0
          %v1489 = vmax.f32 %v1425, 0.0
          %v1490 = vmax.f32 %v1426, 0.0
          %v1491 = vmax.f32 %v1427, 0.0
          %v1492 = vmax.f32 %v1428, 0.0
          %v1493 = vmax.f32 %v1429, 0.0
          %v1494 = vmax.f32 %v1430, 0.0
          %v1495 = vmax.f32 %v1431, 0.0
          %v1496 = vmax.f32 %v1432, 0.0
          %v1497 = vmax.f32 %v1433, 0.0
          %v1498 = vmax.f32 %v1434, 0.0
          %v1499 = vmax.f32 %v1435, 0.0
          %v1500 = vmax.f32 %v1436, 0.0
          %v1501 = vmax.f32 %v1437, 0.0
          %v1502 = vmax.f32 %v1438, 0.0
          %v1503 = vmax.f32 %v1439, 0.0
          %v1504 = vmax.f32 %v1440, 0.0
          %v1505 = vpack.c.bf16 %v1442, %v1441
          %v1506 = vpack.c.bf16 %v1444, %v1443
          %v1507 = vpack.c.bf16 %v1446, %v1445
          %v1508 = vpack.c.bf16 %v1448, %v1447
          %v1509 = vpack.c.bf16 %v1450, %v1449
          %v1510 = vpack.c.bf16 %v1452, %v1451
          %v1511 = vpack.c.bf16 %v1454, %v1453
          %v1512 = vpack.c.bf16 %v1456, %v1455
          %v1513 = vpack.c.bf16 %v1458, %v1457
          %v1514 = vpack.c.bf16 %v1460, %v1459
          %v1515 = vpack.c.bf16 %v1462, %v1461
          %v1516 = vpack.c.bf16 %v1464, %v1463
          %v1517 = vpack.c.bf16 %v1466, %v1465
          %v1518 = vpack.c.bf16 %v1468, %v1467
          %v1519 = vpack.c.bf16 %v1470, %v1469
          %v1520 = vpack.c.bf16 %v1472, %v1471
          %v1521 = vpack.c.bf16 %v1474, %v1473
          %v1522 = vpack.c.bf16 %v1476, %v1475
          %v1523 = vpack.c.bf16 %v1478, %v1477
          %v1524 = vpack.c.bf16 %v1480, %v1479
          %v1525 = vpack.c.bf16 %v1482, %v1481
          %v1526 = vpack.c.bf16 %v1484, %v1483
          %v1527 = vpack.c.bf16 %v1486, %v1485
          %v1528 = vpack.c.bf16 %v1488, %v1487
          %v1529 = vpack.c.bf16 %v1490, %v1489
          %v1530 = vpack.c.bf16 %v1492, %v1491
          %v1531 = vpack.c.bf16 %v1494, %v1493
          %v1532 = vpack.c.bf16 %v1496, %v1495
          %v1533 = vpack.c.bf16 %v1498, %v1497
          %v1534 = vpack.c.bf16 %v1500, %v1499
          %v1535 = vpack.c.bf16 %v1502, %v1501
          %v1536 = vpack.c.bf16 %v1504, %v1503
          %v1569 = vunpack.c.l.b16 %v1505
          %v1570 = vunpack.c.h.b16 %v1505
          %v1571 = vunpack.c.l.b16 %v1506
          %v1572 = vunpack.c.h.b16 %v1506
          %v1573 = vunpack.c.l.b16 %v1507
          %v1574 = vunpack.c.h.b16 %v1507
          %v1575 = vunpack.c.l.b16 %v1508
          %v1576 = vunpack.c.h.b16 %v1508
          %v1577 = vunpack.c.l.b16 %v1509
          %v1578 = vunpack.c.h.b16 %v1509
          %v1579 = vunpack.c.l.b16 %v1510
          %v1580 = vunpack.c.h.b16 %v1510
          %v1581 = vunpack.c.l.b16 %v1511
          %v1582 = vunpack.c.h.b16 %v1511
          %v1583 = vunpack.c.l.b16 %v1512
          %v1584 = vunpack.c.h.b16 %v1512
          %v1585 = vunpack.c.l.b16 %v1513
          %v1586 = vunpack.c.h.b16 %v1513
          %v1587 = vunpack.c.l.b16 %v1514
          %v1588 = vunpack.c.h.b16 %v1514
          %v1589 = vunpack.c.l.b16 %v1515
          %v1590 = vunpack.c.h.b16 %v1515
          %v1591 = vunpack.c.l.b16 %v1516
          %v1592 = vunpack.c.h.b16 %v1516
          %v1593 = vunpack.c.l.b16 %v1517
          %v1594 = vunpack.c.h.b16 %v1517
          %v1595 = vunpack.c.l.b16 %v1518
          %v1596 = vunpack.c.h.b16 %v1518
          %v1597 = vunpack.c.l.b16 %v1519
          %v1598 = vunpack.c.h.b16 %v1519
          %v1599 = vunpack.c.l.b16 %v1520
          %v1600 = vunpack.c.h.b16 %v1520
          %v1601 = vunpack.c.l.b16 %v1521
          %v1602 = vunpack.c.h.b16 %v1521
          %v1603 = vunpack.c.l.b16 %v1522
          %v1604 = vunpack.c.h.b16 %v1522
          %v1605 = vunpack.c.l.b16 %v1523
          %v1606 = vunpack.c.h.b16 %v1523
          %v1607 = vunpack.c.l.b16 %v1524
          %v1608 = vunpack.c.h.b16 %v1524
          %v1609 = vunpack.c.l.b16 %v1525
          %v1610 = vunpack.c.h.b16 %v1525
          %v1611 = vunpack.c.l.b16 %v1526
          %v1612 = vunpack.c.h.b16 %v1526
          %v1613 = vunpack.c.l.b16 %v1527
          %v1614 = vunpack.c.h.b16 %v1527
          %v1615 = vunpack.c.l.b16 %v1528
          %v1616 = vunpack.c.h.b16 %v1528
          %v1617 = vunpack.c.l.b16 %v1529
          %v1618 = vunpack.c.h.b16 %v1529
          %v1619 = vunpack.c.l.b16 %v1530
          %v1620 = vunpack.c.h.b16 %v1530
          %v1621 = vunpack.c.l.b16 %v1531
          %v1622 = vunpack.c.h.b16 %v1531
          %v1623 = vunpack.c.l.b16 %v1532
          %v1624 = vunpack.c.h.b16 %v1532
          %v1625 = vunpack.c.l.b16 %v1533
          %v1626 = vunpack.c.h.b16 %v1533
          %v1627 = vunpack.c.l.b16 %v1534
          %v1628 = vunpack.c.h.b16 %v1534
          %v1629 = vunpack.c.l.b16 %v1535
          %v1630 = vunpack.c.h.b16 %v1535
          %v1631 = vunpack.c.l.b16 %v1536
          %v1632 = vunpack.c.h.b16 %v1536
          %v1633 = vpack.c.b16 %v1569, %v1569
          %v1634 = vpack.c.b16 %v1570, %v1570
          %v1635 = vpack.c.b16 %v1571, %v1571
          %v1636 = vpack.c.b16 %v1572, %v1572
          %v1637 = vpack.c.b16 %v1573, %v1573
          %v1638 = vpack.c.b16 %v1574, %v1574
          %v1639 = vpack.c.b16 %v1575, %v1575
          %v1640 = vpack.c.b16 %v1576, %v1576
          %v1641 = vpack.c.b16 %v1577, %v1577
          %v1642 = vpack.c.b16 %v1578, %v1578
          %v1643 = vpack.c.b16 %v1579, %v1579
          %v1644 = vpack.c.b16 %v1580, %v1580
          %v1645 = vpack.c.b16 %v1581, %v1581
          %v1646 = vpack.c.b16 %v1582, %v1582
          %v1647 = vpack.c.b16 %v1583, %v1583
          %v1648 = vpack.c.b16 %v1584, %v1584
          %v1649 = vpack.c.b16 %v1585, %v1585
          %v1650 = vpack.c.b16 %v1586, %v1586
          %v1651 = vpack.c.b16 %v1587, %v1587
          %v1652 = vpack.c.b16 %v1588, %v1588
          %v1653 = vpack.c.b16 %v1589, %v1589
          %v1654 = vpack.c.b16 %v1590, %v1590
          %v1655 = vpack.c.b16 %v1591, %v1591
          %v1656 = vpack.c.b16 %v1592, %v1592
          %v1657 = vpack.c.b16 %v1593, %v1593
          %v1658 = vpack.c.b16 %v1594, %v1594
          %v1659 = vpack.c.b16 %v1595, %v1595
          %v1660 = vpack.c.b16 %v1596, %v1596
          %v1661 = vpack.c.b16 %v1597, %v1597
          %v1662 = vpack.c.b16 %v1598, %v1598
          %v1663 = vpack.c.b16 %v1599, %v1599
          %v1664 = vpack.c.b16 %v1600, %v1600
          %v1665 = vpack.c.b16 %v1601, %v1601
          %v1666 = vpack.c.b16 %v1602, %v1602
          %v1667 = vpack.c.b16 %v1603, %v1603
          %v1668 = vpack.c.b16 %v1604, %v1604
          %v1669 = vpack.c.b16 %v1605, %v1605
          %v1670 = vpack.c.b16 %v1606, %v1606
          %v1671 = vpack.c.b16 %v1607, %v1607
          %v1672 = vpack.c.b16 %v1608, %v1608
          %v1673 = vpack.c.b16 %v1609, %v1609
          %v1674 = vpack.c.b16 %v1610, %v1610
          %v1675 = vpack.c.b16 %v1611, %v1611
          %v1676 = vpack.c.b16 %v1612, %v1612
          %v1677 = vpack.c.b16 %v1613, %v1613
          %v1678 = vpack.c.b16 %v1614, %v1614
          %v1679 = vpack.c.b16 %v1615, %v1615
          %v1680 = vpack.c.b16 %v1616, %v1616
          %v1681 = vpack.c.b16 %v1617, %v1617
          %v1682 = vpack.c.b16 %v1618, %v1618
          %v1683 = vpack.c.b16 %v1619, %v1619
          %v1684 = vpack.c.b16 %v1620, %v1620
          %v1685 = vpack.c.b16 %v1621, %v1621
          %v1686 = vpack.c.b16 %v1622, %v1622
          %v1687 = vpack.c.b16 %v1623, %v1623
          %v1688 = vpack.c.b16 %v1624, %v1624
          %v1689 = vpack.c.b16 %v1625, %v1625
          %v1690 = vpack.c.b16 %v1626, %v1626
          %v1691 = vpack.c.b16 %v1627, %v1627
          %v1692 = vpack.c.b16 %v1628, %v1628
          %v1693 = vpack.c.b16 %v1629, %v1629
          %v1694 = vpack.c.b16 %v1630, %v1630
          %v1695 = vpack.c.b16 %v1631, %v1631
          %v1696 = vpack.c.b16 %v1632, %v1632
          %1761 = vst [vmem:[%s352] sm:$0xf] %v1633
          %1762 = vst [vmem:[%s352 + $0x4] sm:$0xf] %v1634
          %1763 = vst [vmem:[%s352 + $0x8] sm:$0xf] %v1635
          %1764 = vst [vmem:[%s352 + $0xc] sm:$0xf] %v1636
          %1765 = vst [vmem:[%s352 + $0x10] sm:$0xf] %v1637
          %1766 = vst [vmem:[%s352 + $0x14] sm:$0xf] %v1638
          %1767 = vst [vmem:[%s352 + $0x18] sm:$0xf] %v1639
          %1768 = vst [vmem:[%s352 + $0x1c] sm:$0xf] %v1640
          %1769 = vst [vmem:[%s352 + $0x20] sm:$0xf] %v1641
          %1770 = vst [vmem:[%s352 + $0x24] sm:$0xf] %v1642
          %1771 = vst [vmem:[%s352 + $0x28] sm:$0xf] %v1643
          %1772 = vst [vmem:[%s352 + $0x2c] sm:$0xf] %v1644
          %1773 = vst [vmem:[%s352 + $0x30] sm:$0xf] %v1645
          %1774 = vst [vmem:[%s352 + $0x34] sm:$0xf] %v1646
          %1775 = vst [vmem:[%s352 + $0x38] sm:$0xf] %v1647
          %1776 = vst [vmem:[%s352 + $0x3c] sm:$0xf] %v1648
          %1777 = vst [vmem:[%s352 + $0x40] sm:$0xf] %v1649
          %1778 = vst [vmem:[%s352 + $0x44] sm:$0xf] %v1650
          %1779 = vst [vmem:[%s352 + $0x48] sm:$0xf] %v1651
          %1780 = vst [vmem:[%s352 + $0x4c] sm:$0xf] %v1652
          %1781 = vst [vmem:[%s352 + $0x50] sm:$0xf] %v1653
          %1782 = vst [vmem:[%s352 + $0x54] sm:$0xf] %v1654
          %1783 = vst [vmem:[%s352 + $0x58] sm:$0xf] %v1655
          %1784 = vst [vmem:[%s352 + $0x5c] sm:$0xf] %v1656
          %1785 = vst [vmem:[%s352 + $0x60] sm:$0xf] %v1657
          %1786 = vst [vmem:[%s352 + $0x64] sm:$0xf] %v1658
          %1787 = vst [vmem:[%s352 + $0x68] sm:$0xf] %v1659
          %1788 = vst [vmem:[%s352 + $0x6c] sm:$0xf] %v1660
          %1789 = vst [vmem:[%s352 + $0x70] sm:$0xf] %v1661
          %1790 = vst [vmem:[%s352 + $0x74] sm:$0xf] %v1662
          %1791 = vst [vmem:[%s352 + $0x78] sm:$0xf] %v1663
          %1792 = vst [vmem:[%s352 + $0x7c] sm:$0xf] %v1664
          %1793 = vst [vmem:[%s352 + $0x80] sm:$0xf] %v1665
          %1794 = vst [vmem:[%s352 + $0x84] sm:$0xf] %v1666
          %1795 = vst [vmem:[%s352 + $0x88] sm:$0xf] %v1667
          %1796 = vst [vmem:[%s352 + $0x8c] sm:$0xf] %v1668
          %1797 = vst [vmem:[%s352 + $0x90] sm:$0xf] %v1669
          %1798 = vst [vmem:[%s352 + $0x94] sm:$0xf] %v1670
          %1799 = vst [vmem:[%s352 + $0x98] sm:$0xf] %v1671
          %1800 = vst [vmem:[%s352 + $0x9c] sm:$0xf] %v1672
          %1801 = vst [vmem:[%s352 + $0xa0] sm:$0xf] %v1673
          %1802 = vst [vmem:[%s352 + $0xa4] sm:$0xf] %v1674
          %1803 = vst [vmem:[%s352 + $0xa8] sm:$0xf] %v1675
          %1804 = vst [vmem:[%s352 + $0xac] sm:$0xf] %v1676
          %1805 = vst [vmem:[%s352 + $0xb0] sm:$0xf] %v1677
          %1806 = vst [vmem:[%s352 + $0xb4] sm:$0xf] %v1678
          %1807 = vst [vmem:[%s352 + $0xb8] sm:$0xf] %v1679
          %1808 = vst [vmem:[%s352 + $0xbc] sm:$0xf] %v1680
          %1809 = vst [vmem:[%s352 + $0xc0] sm:$0xf] %v1681
          %1810 = vst [vmem:[%s352 + $0xc4] sm:$0xf] %v1682
          %1811 = vst [vmem:[%s352 + $0xc8] sm:$0xf] %v1683
          %1812 = vst [vmem:[%s352 + $0xcc] sm:$0xf] %v1684
          %1813 = vst [vmem:[%s352 + $0xd0] sm:$0xf] %v1685
          %1814 = vst [vmem:[%s352 + $0xd4] sm:$0xf] %v1686
          %1815 = vst [vmem:[%s352 + $0xd8] sm:$0xf] %v1687
          %1816 = vst [vmem:[%s352 + $0xdc] sm:$0xf] %v1688
          %1817 = vst [vmem:[%s352 + $0xe0] sm:$0xf] %v1689
          %1818 = vst [vmem:[%s352 + $0xe4] sm:$0xf] %v1690
          %1819 = vst [vmem:[%s352 + $0xe8] sm:$0xf] %v1691
          %1820 = vst [vmem:[%s352 + $0xec] sm:$0xf] %v1692
          %1821 = vst [vmem:[%s352 + $0xf0] sm:$0xf] %v1693
          %1822 = vst [vmem:[%s352 + $0xf4] sm:$0xf] %v1694
          %1823 = vst [vmem:[%s352 + $0xf8] sm:$0xf] %v1695
          %1824 = vst [vmem:[%s352 + $0xfc] sm:$0xf] %v1696
        $region56: #{tpu_custom_call.1} parent=35 // pred_fallthru
          _
        %s1825 = sand.u32 %s178, 1
        %s1826 = scalar_lea.sflag [#allocation5], %s1825
        %s1827 = sand.u32 %s178, 1
        %s1828 = smul.addr %s1827, 256
        %s1829 = scalar_lea.vmem [#allocation9], %s1828
        // Predicated region
        $region57: #{tpu_custom_call.1} parent=35 // pred_check
          %p1830 = pneg %p188
        $region58: #{tpu_custom_call.1} parent=35 // pred_check_branch
          %1832 = sbr.rel (%p1830) target = $region60
        $region59: #{tpu_custom_call.1} parent=35 // pred_region
          %s1833 = smul.u32 64, %s31
          %s1835 = ssub.s32 4096, 4096
          %1836 = vsyncadd %s1826, %s1835
          %s1837 = sadd.s32 %s32, %s1833
          %s1838 = smul.addr %s30, 64
          %s1839 = sadd.s32 %s1837, %s1838
          %s1840 = smul.addr %s1839, 64
          %s1841 = scalar_lea.hbm %s4, %s1840
          %s1842 = sshll.u32 %s1829, 4
          %s1843 = int_to_ptr.vmem [resolvable:$true] %s1842
          %1848 = dma.vmem_to_hbm [thread:$0]  %s1843, 4096, %s1841, %s1826, 64, 64, 4
        $region60: #{tpu_custom_call.1} parent=35 // pred_fallthru
          _
      $region36: #{tpu_custom_call.1} parent=5 // pred_fallthru
        _
      %p1849 = scmp.le.s32.totalorder 2, %s19
      // Predicated region
      $region61: #{tpu_custom_call.1} parent=5 // pred_check
        %p1850 = pneg %p1849
      $region62: #{tpu_custom_call.1} parent=5 // pred_check_branch
        %1852 = sbr.rel (%p1850) target = $region64
      $region63: #{tpu_custom_call.1} parent=5 // pred_region
        %s1853 = ssub.s32 %s19, 2
        // Predicated region
        $region65: #{tpu_custom_call.1} parent=63 // pred_check
          %p1854 = pneg %p194
        $region66: #{tpu_custom_call.1} parent=63 // pred_check_branch
          %1856 = sbr.rel (%p1854) target = $region68
        $region67: #{tpu_custom_call.1} parent=63 // pred_region
          %s1857 = sand.u32 %s179, 1
          %s1858 = scalar_lea.sflag [#allocation5], %s1857
          %s1859 = sand.u32 %s179, 1
          %s1860 = smul.addr %s1859, 256
          %s1861 = scalar_lea.vmem [#allocation9], %s1860
          %1862 = dma.done %s1858, 4096
        $region68: #{tpu_custom_call.1} parent=63 // pred_fallthru
          _
      $region64: #{tpu_custom_call.1} parent=5 // pred_fallthru
        _
    $region6: #{tpu_custom_call.1} parent=1 // loop_footer
      %s23 = sadd.s32 1, %s19
    $region7: #{tpu_custom_call.1} parent=1 // loop_footer_branch
      %18 = sbr.rel target = $region3
    $region8: #{tpu_custom_call.1} parent=1 // loop_exit
      _
    %1863 = vsyncpa [#allocation4], 1
    %s1864 = scalar_lea.sflag [#allocation4], 1
    %1865 = vsyncpa %s1864, 1
    %1866 = vsyncpa [#allocation7], 1
    %s1867 = scalar_lea.sflag [#allocation7], 1
    %1868 = vsyncpa %s1867, 1
    %1869 = vsyncpa [#allocation5], 1
    %s1870 = scalar_lea.sflag [#allocation5], 1
    %1871 = vsyncpa %s1870, 1

</llo_original>
